<compile_context>
chip_gen: v6e
topology: v6e:2x2x1
jax: 0.10.0
libtpu: 0.0.40
codegen_flags: <defaults>
</compile_context>

<pallas_src>
import jax
import jax.numpy as jnp
from jax import lax
from jax.experimental import pallas as pl
from jax.experimental.pallas import tpu as pltpu


def mlp_kernel(x_ref, w1_ref, b1_ref, w2_ref, b2_ref, w3t_ref, b3_ref, o_ref):
    # x_ref: (batch_tile, 12); o_ref: (1, batch_tile) -- lane-dense along the batch.
    x = x_ref[...]

    # fc1 + ReLU -> (tile, 16)
    h1 = jnp.dot(x, w1_ref[...], preferred_element_type=jnp.float32) + b1_ref[...]
    h1 = jnp.maximum(h1, 0.0)

    # fc2 + ReLU -> (tile, 8)
    h2 = jnp.dot(h1, w2_ref[...], preferred_element_type=jnp.float32) + b2_ref[...]
    h2 = jnp.maximum(h2, 0.0)

    # fc3: W3^T (padded to (8,8), row 0 is the real row) contracted against h2's feature dim
    # (A @ B^T form) -> (8, tile); row 0 is z^T, already lane-dense along the batch.
    z8 = lax.dot_general(
        w3t_ref[...], h2,
        dimension_numbers=(((1,), (1,)), ((), ())),
        preferred_element_type=jnp.float32,
    )
    z = z8[0:1, :] + b3_ref[...]  # (1, tile)

    # Sigmoid via tanh: sigmoid(z) = 0.5 * (tanh(z/2) + 1). tanh runs on the EUP (own VLIW slot),
    # avoiding a VPU divide; numerically equivalent to 1/(1+exp(-z)) at f32 precision.
    o_ref[...] = (0.5 * jnp.tanh(0.5 * z) + 0.5).astype(o_ref.dtype)


def mlp_forward(x, params, *, batch_tile=1024):
    """x: (B, 12) float32. params: dict of w1,b1,w2,b2,w3,b3 (weights stored (in, out))."""
    B, D_in = x.shape
    assert D_in == 12
    assert batch_tile % 128 == 0, "batch_tile must be a multiple of 128 (lane-dense output)"

    w1, b1 = params["w1"], params["b1"]  # (12, 16), (1, 16)
    w2, b2 = params["w2"], params["b2"]  # (16,  8), (1,  8)
    w3, b3 = params["w3"], params["b3"]  # ( 8,  1), (1,  1)

    # Pack W3^T into an (8, 8) block (row 0 = w3^T, rest zeros) so the final layer is a fully
    # standard small matmul producing a lane-dense (1, tile) row.
    w3t = jnp.zeros((8, 8), jnp.float32).at[0, :].set(w3[:, 0])

    # Pad the batch to a multiple of batch_tile; padded rows are dropped after the kernel.
    n_tiles = pl.cdiv(B, batch_tile)
    pb = n_tiles * batch_tile
    xp = x if pb == B else jnp.pad(x, ((0, pb - B), (0, 0)))

    def full_spec(a):
        # Tiny parameters: constant-index full blocks, fetched once and VMEM-resident.
        return pl.BlockSpec(a.shape, lambda i: (0,) * a.ndim)

    out = pl.pallas_call(
        mlp_kernel,
        out_shape=jax.ShapeDtypeStruct((1, pb), jnp.float32),
        grid_spec=pltpu.PrefetchScalarGridSpec(
            num_scalar_prefetch=0,
            grid=(n_tiles,),
            in_specs=[
                pl.BlockSpec((batch_tile, D_in), lambda i: (i, 0)),  # x tile (batch on sublanes)
                full_spec(w1), full_spec(b1),
                full_spec(w2), full_spec(b2),
                full_spec(w3t), full_spec(b3),
            ],
            # Lane-dense output: each grid step writes its own (1, batch_tile) slab.
            out_specs=pl.BlockSpec((1, batch_tile), lambda i: (0, i)),
        ),
        compiler_params=pltpu.CompilerParams(
            dimension_semantics=("parallel",),  # batch axis shards across TCs on v7x
        ),
    )(xp, w1, b1, w2, b2, w3t, b3)

    # (1, pb) -> (B, 1): pure metadata reshape + slice of padded rows.
    return out[0, :B].reshape(B, 1)


def init_params(key):
    """Deterministic init matching the torch module's layer shapes (weights stored (in, out))."""
    k1, k2, k3, k4, k5, k6 = jax.random.split(key, 6)

    def linear(kw, kb, fan_in, fan_out):
        bound = 1.0 / jnp.sqrt(jnp.float32(fan_in))
        w = jax.random.uniform(kw, (fan_in, fan_out), jnp.float32, -bound, bound)
        b = jax.random.uniform(kb, (1, fan_out), jnp.float32, -bound, bound)
        return w, b

    w1, b1 = linear(k1, k2, 12, 16)
    w2, b2 = linear(k3, k4, 16, 8)
    w3, b3 = linear(k5, k6, 8, 1)
    return {"w1": w1, "b1": b1, "w2": w2, "b2": b2, "w3": w3, "b3": b3}


def mlp_reference(x, p):
    h1 = jnp.maximum(x @ p["w1"] + p["b1"], 0.0)
    h2 = jnp.maximum(h1 @ p["w2"] + p["b2"], 0.0)
    return jax.nn.sigmoid(h2 @ p["w3"] + p["b3"])


if __name__ == "__main__":
    key = jax.random.PRNGKey(0)
    kx, kp = jax.random.split(key)

    # Non-multiple batch exercises the padding path; batch_tile=512 -> 2 grid steps
    # (multi-step "parallel" grid so both v7x TensorCores stream).
    B = 1000
    x = jax.random.normal(kx, (B, 12), dtype=jnp.float32)
    params = init_params(kp)

    out = mlp_forward(x, params, batch_tile=512)
    out = jax.block_until_ready(out)

    ref = mlp_reference(x, params)
    assert out.shape == (B, 1)
    assert jnp.allclose(out, ref, atol=1e-5, rtol=1e-5), "mismatch vs reference"

    print("KERNEL_OK")
</pallas_src>

<mosaic_0001>
module attributes {stable_mosaic.version = 11 : i64} {
  func.func @mlp_kernel(%arg0: i32, %arg1: memref<512x12xf32, #tpu.memory_space<vmem>>, %arg2: memref<12x16xf32, #tpu.memory_space<vmem>>, %arg3: memref<1x16xf32, #tpu.memory_space<vmem>>, %arg4: memref<16x8xf32, #tpu.memory_space<vmem>>, %arg5: memref<1x8xf32, #tpu.memory_space<vmem>>, %arg6: memref<8x8xf32, #tpu.memory_space<vmem>>, %arg7: memref<1x1xf32, #tpu.memory_space<vmem>>, %arg8: memref<1x512xf32, #tpu.memory_space<vmem>>) attributes {dimension_semantics = [#tpu.dimension_semantics<parallel>], iteration_bounds = array<i64: 2>, scalar_prefetch = 0 : i64, scratch_operands = 0 : i64, tpu.core_type = #tpu.core_type<tc>, window_params = [{transform_indices = @transform_0, window_bounds = array<i64: 512, 12>}, {pipeline_mode = #tpu.pipeline_mode<synchronous>, transform_indices = @transform_1, window_bounds = array<i64: 12, 16>}, {pipeline_mode = #tpu.pipeline_mode<synchronous>, transform_indices = @transform_2, window_bounds = array<i64: 1, 16>}, {pipeline_mode = #tpu.pipeline_mode<synchronous>, transform_indices = @transform_3, window_bounds = array<i64: 16, 8>}, {pipeline_mode = #tpu.pipeline_mode<synchronous>, transform_indices = @transform_4, window_bounds = array<i64: 1, 8>}, {pipeline_mode = #tpu.pipeline_mode<synchronous>, transform_indices = @transform_5, window_bounds = array<i64: 8, 8>}, {pipeline_mode = #tpu.pipeline_mode<synchronous>, transform_indices = @transform_6, window_bounds = array<i64: 1, 1>}, {transform_indices = @transform_7, window_bounds = array<i64: 1, 512>}]} {
    %c0 = arith.constant 0 : index
    %c0_0 = arith.constant 0 : index
    %0 = vector.load %arg1[%c0, %c0_0] : memref<512x12xf32, #tpu.memory_space<vmem>>, vector<512x12xf32>
    %c0_1 = arith.constant 0 : index
    %c0_2 = arith.constant 0 : index
    %1 = vector.load %arg2[%c0_1, %c0_2] : memref<12x16xf32, #tpu.memory_space<vmem>>, vector<12x16xf32>
    %cst = arith.constant dense<0.000000e+00> : vector<512x16xf32>
    %2 = tpu.matmul %0, %1, %cst {dimension_numbers = #tpu.dot_dimension_numbers<[1], [0], [0], [1], [0, 0, 1, 1], [], []>} : vector<512x12xf32>, vector<12x16xf32>, vector<512x16xf32> -> vector<512x16xf32>
    %c0_3 = arith.constant 0 : index
    %c0_4 = arith.constant 0 : index
    %3 = vector.load %arg3[%c0_3, %c0_4] : memref<1x16xf32, #tpu.memory_space<vmem>>, vector<1x16xf32>
    %4 = vector.broadcast %3 : vector<1x16xf32> to vector<512x16xf32>
    %5 = arith.addf %2, %4 : vector<512x16xf32>
    %cst_5 = arith.constant 0.000000e+00 : f32
    %6 = vector.broadcast %cst_5 : f32 to vector<512x16xf32>
    %7 = arith.maximumf %5, %6 : vector<512x16xf32>
    %c0_6 = arith.constant 0 : index
    %c0_7 = arith.constant 0 : index
    %8 = vector.load %arg4[%c0_6, %c0_7] : memref<16x8xf32, #tpu.memory_space<vmem>>, vector<16x8xf32>
    %cst_8 = arith.constant dense<0.000000e+00> : vector<512x8xf32>
    %9 = tpu.matmul %7, %8, %cst_8 {dimension_numbers = #tpu.dot_dimension_numbers<[1], [0], [0], [1], [0, 0, 1, 1], [], []>} : vector<512x16xf32>, vector<16x8xf32>, vector<512x8xf32> -> vector<512x8xf32>
    %c0_9 = arith.constant 0 : index
    %c0_10 = arith.constant 0 : index
    %10 = vector.load %arg5[%c0_9, %c0_10] : memref<1x8xf32, #tpu.memory_space<vmem>>, vector<1x8xf32>
    %11 = vector.broadcast %10 : vector<1x8xf32> to vector<512x8xf32>
    %12 = arith.addf %9, %11 : vector<512x8xf32>
    %cst_11 = arith.constant 0.000000e+00 : f32
    %13 = vector.broadcast %cst_11 : f32 to vector<512x8xf32>
    %14 = arith.maximumf %12, %13 : vector<512x8xf32>
    %c0_12 = arith.constant 0 : index
    %c0_13 = arith.constant 0 : index
    %15 = vector.load %arg6[%c0_12, %c0_13] : memref<8x8xf32, #tpu.memory_space<vmem>>, vector<8x8xf32>
    %cst_14 = arith.constant dense<0.000000e+00> : vector<8x512xf32>
    %16 = tpu.matmul %15, %14, %cst_14 {dimension_numbers = #tpu.dot_dimension_numbers<[1], [1], [0], [0], [0, 0, 1, 0], [], []>} : vector<8x8xf32>, vector<512x8xf32>, vector<8x512xf32> -> vector<8x512xf32>
    %17 = vector.extract_strided_slice %16 {offsets = [0, 0], sizes = [1, 512], strides = [1, 1]} : vector<8x512xf32> to vector<1x512xf32>
    %c0_15 = arith.constant 0 : index
    %c0_16 = arith.constant 0 : index
    %18 = vector.load %arg7[%c0_15, %c0_16] : memref<1x1xf32, #tpu.memory_space<vmem>>, vector<1x1xf32>
    %19 = vector.broadcast %18 : vector<1x1xf32> to vector<1x512xf32>
    %20 = arith.addf %17, %19 : vector<1x512xf32>
    %cst_17 = arith.constant 5.000000e-01 : f32
    %21 = vector.broadcast %cst_17 : f32 to vector<1x512xf32>
    %22 = arith.mulf %21, %20 : vector<1x512xf32>
    %23 = math.tanh %22 : vector<1x512xf32>
    %cst_18 = arith.constant 5.000000e-01 : f32
    %24 = vector.broadcast %cst_18 : f32 to vector<1x512xf32>
    %25 = arith.mulf %24, %23 : vector<1x512xf32>
    %cst_19 = arith.constant 5.000000e-01 : f32
    %26 = vector.broadcast %cst_19 : f32 to vector<1x512xf32>
    %27 = arith.addf %25, %26 : vector<1x512xf32>
    %c0_20 = arith.constant 0 : index
    %c0_21 = arith.constant 0 : index
    %28 = vector.load %arg8[%c0_20, %c0_21] : memref<1x512xf32, #tpu.memory_space<vmem>>, vector<1x512xf32>
    tpu.vector_store %arg8[%c0_20, %c0_21], %27 {strides = array<i32>} : memref<1x512xf32, #tpu.memory_space<vmem>>, vector<1x512xf32>,
    return
  }
  func.func @transform_0(%arg0: i32) -> (i32, i32) {
    %c0_i32 = arith.constant 0 : i32
    %c0_i32_0 = arith.constant 0 : i32
    return %arg0, %c0_i32 : i32, i32
  }
  func.func @transform_1(%arg0: i32) -> (i32, i32) {
    %c0_i32 = arith.constant 0 : i32
    %c0_i32_0 = arith.constant 0 : i32
    %c0_i32_1 = arith.constant 0 : i32
    return %c0_i32, %c0_i32_0 : i32, i32
  }
  func.func @transform_2(%arg0: i32) -> (i32, i32) {
    %c0_i32 = arith.constant 0 : i32
    %c0_i32_0 = arith.constant 0 : i32
    %c0_i32_1 = arith.constant 0 : i32
    return %c0_i32, %c0_i32_0 : i32, i32
  }
  func.func @transform_3(%arg0: i32) -> (i32, i32) {
    %c0_i32 = arith.constant 0 : i32
    %c0_i32_0 = arith.constant 0 : i32
    %c0_i32_1 = arith.constant 0 : i32
    return %c0_i32, %c0_i32_0 : i32, i32
  }
  func.func @transform_4(%arg0: i32) -> (i32, i32) {
    %c0_i32 = arith.constant 0 : i32
    %c0_i32_0 = arith.constant 0 : i32
    %c0_i32_1 = arith.constant 0 : i32
    return %c0_i32, %c0_i32_0 : i32, i32
  }
  func.func @transform_5(%arg0: i32) -> (i32, i32) {
    %c0_i32 = arith.constant 0 : i32
    %c0_i32_0 = arith.constant 0 : i32
    %c0_i32_1 = arith.constant 0 : i32
    return %c0_i32, %c0_i32_0 : i32, i32
  }
  func.func @transform_6(%arg0: i32) -> (i32, i32) {
    %c0_i32 = arith.constant 0 : i32
    %c0_i32_0 = arith.constant 0 : i32
    %c0_i32_1 = arith.constant 0 : i32
    return %c0_i32, %c0_i32_0 : i32, i32
  }
  func.func @transform_7(%arg0: i32) -> (i32, i32) {
    %c0_i32 = arith.constant 0 : i32
    %c0_i32_0 = arith.constant 0 : i32
    return %c0_i32, %arg0 : i32, i32
  }
}

</mosaic_0001>

<llo_original>
// kernel: tpu_custom_call.1
$region0: #{tpu_custom_call.1}
  #allocation0 [shape = 'u32[]', space=smem, size = 0x4, offset = 0x4, fixed_abs, tag = 'smem constant byte address 0x4 - core index']
  #allocation1 [shape = 'u32[144,128]{1,0:T(1,128)}', space=vmem, size = 0x12000, scoped, tag = 'internal scratch']
  #allocation2 [shape = 'f32[1,1]{1,0:T(1,128)S(1)}', space=vmem, size = 0x200, scoped, tag = 'scoped memory for tpu_custom_call.1']
  %s0 = inlined_call_operand.vmem [shape: f32[1024,12], index: 0, kind: input, shape index: {}]
  %s1 = inlined_call_operand.vmem [shape: f32[12,16], index: 1, kind: input, shape index: {}]
  %s2 = inlined_call_operand.vmem [shape: f32[1,16], index: 2, kind: input, shape index: {}]
  %s3 = inlined_call_operand.vmem [shape: f32[16,8], index: 3, kind: input, shape index: {}]
  %s4 = inlined_call_operand.vmem [shape: f32[1,8], index: 4, kind: input, shape index: {}]
  %s5 = inlined_call_operand.vmem [shape: f32[8,8], index: 5, kind: input, shape index: {}]
  %s6 = inlined_call_operand.<no memory space> [shape: f32[1,1], index: 6, kind: input, shape index: {}]
  %s7 = inlined_call_operand.hbm [shape: f32[1,1024], index: 7, kind: output, shape index: {}]
  %s8 = sld [smem:[#allocation0]]
  $region61: #{tpu_custom_call.1} parent=0
    _
  %s10 = ssub.s32 1, %s8
  %s11 = scalar_select 0, %s10, %s8
  %v12 = vstv %s6
  %13 = vst [vmem:[#allocation2] sm:$0x1] %v12
  $region1: #{tpu_custom_call.1} parent=0
    #allocation3 [shape = 'u8[4096]{0}', space=vmem, size = 0x1000, scoped, tag = 'output window, operand 0']
    #allocation4 [shape = 's32[2]{0}', space=sflag, size = 0x8, scoped, tag = 'scoped memory for tpu_custom_call.1']
    %14 = vsyncpa [#allocation4], 0
    %s15 = scalar_lea.sflag [#allocation4], 1
    %16 = vsyncpa %s15, 0
    loop: start=0, step=1, limit=4
    $region2: #{tpu_custom_call.1} parent=1 // loop_pre_header
      _
    $region3: #{tpu_custom_call.1} parent=1 // loop_header
      %s18 = sphi 0, %s22
      %p19 = scmp.ge.s32.totalorder %s18, 4
      %s28 = sphi 0, %s30
      %s31 = sphi 0, %s28
      %s32 = sphi 0, %s31
      %s48 = sphi 0, %s32
      %s52 = sphi 0, %s52
      %s54 = sphi 0, %s52
      %s55 = sphi 0, %s54
      %s69 = sphi 0, %s55
      %s73 = sphi 0, %s73
      %s75 = sphi 0, %s73
      %s76 = sphi 0, %s75
      %s90 = sphi 0, %s76
      %s94 = sphi 0, %s94
      %s96 = sphi 0, %s94
      %s97 = sphi 0, %s96
      %s111 = sphi 0, %s97
      %s115 = sphi 0, %s115
      %s117 = sphi 0, %s115
      %s118 = sphi 0, %s117
      %s132 = sphi 0, %s118
      %s136 = sphi 0, %s136
      %s138 = sphi 0, %s136
      %s139 = sphi 0, %s138
      %s153 = sphi 0, %s139
      %s157 = sphi 0, %s157
      %s159 = sphi 0, %s157
      %s160 = sphi 0, %s159
      %s174 = sphi 0, %s160
      %s180 = sphi 0, %s182
      %s183 = sphi 0, %s180
      %s184 = sphi 0, %s183
      %s200 = sphi 0, %s184
    $region4: #{tpu_custom_call.1} parent=1 // loop_header_branch
      %21 = sbr.rel (%p19) target = $region8
    $region5: #{tpu_custom_call.1} parent=1 // loop_body
      %s23 = ssub.s32 %s18, 1
      %s24 = ssub.s32 %s18, 2
      %s25 = sadd.s32 %s18, 1
      %s26 = ssub.s32 %s18, %s25
      %p27 = scmp.eq.s32.totalorder %s26, 0
      %s29 = sadd.s32 %s28, 1
      %s30 = scalar_select %p27, %s28, %s29
      %p33 = pneg %p27
      %p34 = scmp.eq.s32.totalorder %s18, 1
      %p35 = por %p33, %p34
      %p36 = scmp.ne.s32.totalorder %s28, %s31
      %p37 = scmp.eq.s32.totalorder %s18, 0
      %p38 = por %p36, %p37
      %p39 = scmp.ne.s32.totalorder %s28, %s31
      %p40 = scmp.eq.s32.totalorder %s23, 1
      %p41 = por %p39, %p40
      %p42 = scmp.ne.s32.totalorder %s31, %s32
      %p43 = scmp.eq.s32.totalorder %s23, 0
      %p44 = por %p42, %p43
      %p45 = scmp.ne.s32.totalorder %s31, %s32
      %p46 = scmp.eq.s32.totalorder %s24, 1
      %p47 = por %p45, %p46
      %p49 = scmp.ne.s32.totalorder %s32, %s48
      %p50 = scmp.eq.s32.totalorder %s24, 0
      %p51 = por %p49, %p50
      %s53 = sadd.s32 %s52, 1
      %p56 = scmp.eq.s32.totalorder %s18, 1
      %p57 = scmp.ne.s32.totalorder %s52, %s54
      %p58 = scmp.eq.s32.totalorder %s18, 0
      %p59 = por %p57, %p58
      %p60 = scmp.ne.s32.totalorder %s52, %s54
      %p61 = scmp.eq.s32.totalorder %s23, 1
      %p62 = por %p60, %p61
      %p63 = scmp.ne.s32.totalorder %s54, %s55
      %p64 = scmp.eq.s32.totalorder %s23, 0
      %p65 = por %p63, %p64
      %p66 = scmp.ne.s32.totalorder %s54, %s55
      %p67 = scmp.eq.s32.totalorder %s24, 1
      %p68 = por %p66, %p67
      %p70 = scmp.ne.s32.totalorder %s55, %s69
      %p71 = scmp.eq.s32.totalorder %s24, 0
      %p72 = por %p70, %p71
      %s74 = sadd.s32 %s73, 1
      %p77 = scmp.eq.s32.totalorder %s18, 1
      %p78 = scmp.ne.s32.totalorder %s73, %s75
      %p79 = scmp.eq.s32.totalorder %s18, 0
      %p80 = por %p78, %p79
      %p81 = scmp.ne.s32.totalorder %s73, %s75
      %p82 = scmp.eq.s32.totalorder %s23, 1
      %p83 = por %p81, %p82
      %p84 = scmp.ne.s32.totalorder %s75, %s76
      %p85 = scmp.eq.s32.totalorder %s23, 0
      %p86 = por %p84, %p85
      %p87 = scmp.ne.s32.totalorder %s75, %s76
      %p88 = scmp.eq.s32.totalorder %s24, 1
      %p89 = por %p87, %p88
      %p91 = scmp.ne.s32.totalorder %s76, %s90
      %p92 = scmp.eq.s32.totalorder %s24, 0
      %p93 = por %p91, %p92
      %s95 = sadd.s32 %s94, 1
      %p98 = scmp.eq.s32.totalorder %s18, 1
      %p99 = scmp.ne.s32.totalorder %s94, %s96
      %p100 = scmp.eq.s32.totalorder %s18, 0
      %p101 = por %p99, %p100
      %p102 = scmp.ne.s32.totalorder %s94, %s96
      %p103 = scmp.eq.s32.totalorder %s23, 1
      %p104 = por %p102, %p103
      %p105 = scmp.ne.s32.totalorder %s96, %s97
      %p106 = scmp.eq.s32.totalorder %s23, 0
      %p107 = por %p105, %p106
      %p108 = scmp.ne.s32.totalorder %s96, %s97
      %p109 = scmp.eq.s32.totalorder %s24, 1
      %p110 = por %p108, %p109
      %p112 = scmp.ne.s32.totalorder %s97, %s111
      %p113 = scmp.eq.s32.totalorder %s24, 0
      %p114 = por %p112, %p113
      %s116 = sadd.s32 %s115, 1
      %p119 = scmp.eq.s32.totalorder %s18, 1
      %p120 = scmp.ne.s32.totalorder %s115, %s117
      %p121 = scmp.eq.s32.totalorder %s18, 0
      %p122 = por %p120, %p121
      %p123 = scmp.ne.s32.totalorder %s115, %s117
      %p124 = scmp.eq.s32.totalorder %s23, 1
      %p125 = por %p123, %p124
      %p126 = scmp.ne.s32.totalorder %s117, %s118
      %p127 = scmp.eq.s32.totalorder %s23, 0
      %p128 = por %p126, %p127
      %p129 = scmp.ne.s32.totalorder %s117, %s118
      %p130 = scmp.eq.s32.totalorder %s24, 1
      %p131 = por %p129, %p130
      %p133 = scmp.ne.s32.totalorder %s118, %s132
      %p134 = scmp.eq.s32.totalorder %s24, 0
      %p135 = por %p133, %p134
      %s137 = sadd.s32 %s136, 1
      %p140 = scmp.eq.s32.totalorder %s18, 1
      %p141 = scmp.ne.s32.totalorder %s136, %s138
      %p142 = scmp.eq.s32.totalorder %s18, 0
      %p143 = por %p141, %p142
      %p144 = scmp.ne.s32.totalorder %s136, %s138
      %p145 = scmp.eq.s32.totalorder %s23, 1
      %p146 = por %p144, %p145
      %p147 = scmp.ne.s32.totalorder %s138, %s139
      %p148 = scmp.eq.s32.totalorder %s23, 0
      %p149 = por %p147, %p148
      %p150 = scmp.ne.s32.totalorder %s138, %s139
      %p151 = scmp.eq.s32.totalorder %s24, 1
      %p152 = por %p150, %p151
      %p154 = scmp.ne.s32.totalorder %s139, %s153
      %p155 = scmp.eq.s32.totalorder %s24, 0
      %p156 = por %p154, %p155
      %s158 = sadd.s32 %s157, 1
      %p161 = scmp.eq.s32.totalorder %s18, 1
      %p162 = scmp.ne.s32.totalorder %s157, %s159
      %p163 = scmp.eq.s32.totalorder %s18, 0
      %p164 = por %p162, %p163
      %p165 = scmp.ne.s32.totalorder %s157, %s159
      %p166 = scmp.eq.s32.totalorder %s23, 1
      %p167 = por %p165, %p166
      %p168 = scmp.ne.s32.totalorder %s159, %s160
      %p169 = scmp.eq.s32.totalorder %s23, 0
      %p170 = por %p168, %p169
      %p171 = scmp.ne.s32.totalorder %s159, %s160
      %p172 = scmp.eq.s32.totalorder %s24, 1
      %p173 = por %p171, %p172
      %p175 = scmp.ne.s32.totalorder %s160, %s174
      %p176 = scmp.eq.s32.totalorder %s24, 0
      %p177 = por %p175, %p176
      %s178 = ssub.s32 %s18, %s25
      %p179 = scmp.eq.s32.totalorder %s178, 0
      %s181 = sadd.s32 %s180, 1
      %s182 = scalar_select %p179, %s180, %s181
      %p185 = pneg %p179
      %p186 = scmp.eq.s32.totalorder %s18, 1
      %p187 = por %p185, %p186
      %p188 = scmp.ne.s32.totalorder %s180, %s183
      %p189 = scmp.eq.s32.totalorder %s18, 0
      %p190 = por %p188, %p189
      %p191 = scmp.ne.s32.totalorder %s180, %s183
      %p192 = scmp.eq.s32.totalorder %s23, 1
      %p193 = por %p191, %p192
      %p194 = scmp.ne.s32.totalorder %s183, %s184
      %p195 = scmp.eq.s32.totalorder %s23, 0
      %p196 = por %p194, %p195
      %p197 = scmp.ne.s32.totalorder %s183, %s184
      %p198 = scmp.eq.s32.totalorder %s24, 1
      %p199 = por %p197, %p198
      %p201 = scmp.ne.s32.totalorder %s184, %s200
      %p202 = scmp.eq.s32.totalorder %s24, 0
      %p203 = por %p201, %p202
      %p204 = scmp.le.s32.totalorder 1, %s18
      %p205 = scmp.lt.s32.totalorder %s18, 3
      %p206 = pnand %p204, %p205
      %p207 = pneg %p206
      // Predicated region
      $region9: #{tpu_custom_call.1} parent=5 // pred_check
        _
      $region10: #{tpu_custom_call.1} parent=5 // pred_check_branch
        %209 = sbr.rel (%p206) target = $region12
      $region11: #{tpu_custom_call.1} parent=5 // pred_region
        %s210 = ssub.s32 %s18, 1
        // Predicated region
        $region13: #{tpu_custom_call.1} parent=11 // pred_check
          %p211 = pneg %p65
        $region14: #{tpu_custom_call.1} parent=11 // pred_check_branch
          %213 = sbr.rel (%p211) target = $region16
        $region15: #{tpu_custom_call.1} parent=11 // pred_region
          _
        $region16: #{tpu_custom_call.1} parent=11 // pred_fallthru
          _
        // Predicated region
        $region17: #{tpu_custom_call.1} parent=11 // pred_check
          %p214 = pneg %p86
        $region18: #{tpu_custom_call.1} parent=11 // pred_check_branch
          %216 = sbr.rel (%p214) target = $region20
        $region19: #{tpu_custom_call.1} parent=11 // pred_region
          _
        $region20: #{tpu_custom_call.1} parent=11 // pred_fallthru
          _
        // Predicated region
        $region21: #{tpu_custom_call.1} parent=11 // pred_check
          %p217 = pneg %p107
        $region22: #{tpu_custom_call.1} parent=11 // pred_check_branch
          %219 = sbr.rel (%p217) target = $region24
        $region23: #{tpu_custom_call.1} parent=11 // pred_region
          _
        $region24: #{tpu_custom_call.1} parent=11 // pred_fallthru
          _
        // Predicated region
        $region25: #{tpu_custom_call.1} parent=11 // pred_check
          %p220 = pneg %p128
        $region26: #{tpu_custom_call.1} parent=11 // pred_check_branch
          %222 = sbr.rel (%p220) target = $region28
        $region27: #{tpu_custom_call.1} parent=11 // pred_region
          _
        $region28: #{tpu_custom_call.1} parent=11 // pred_fallthru
          _
        // Predicated region
        $region29: #{tpu_custom_call.1} parent=11 // pred_check
          %p223 = pneg %p149
        $region30: #{tpu_custom_call.1} parent=11 // pred_check_branch
          %225 = sbr.rel (%p223) target = $region32
        $region31: #{tpu_custom_call.1} parent=11 // pred_region
          _
        $region32: #{tpu_custom_call.1} parent=11 // pred_fallthru
          _
        // Predicated region
        $region33: #{tpu_custom_call.1} parent=11 // pred_check
          %p226 = pneg %p170
        $region34: #{tpu_custom_call.1} parent=11 // pred_check_branch
          %228 = sbr.rel (%p226) target = $region36
        $region35: #{tpu_custom_call.1} parent=11 // pred_region
          _
        $region36: #{tpu_custom_call.1} parent=11 // pred_fallthru
          _
      $region12: #{tpu_custom_call.1} parent=5 // pred_fallthru
        _
      %p229 = scmp.lt.s32.totalorder %s18, 2
      // Predicated region
      $region37: #{tpu_custom_call.1} parent=5 // pred_check
        %p230 = pneg %p229
      $region38: #{tpu_custom_call.1} parent=5 // pred_check_branch
        %232 = sbr.rel (%p230) target = $region40
      $region39: #{tpu_custom_call.1} parent=5 // pred_region
        // Predicated region
        $region41: #{tpu_custom_call.1} parent=39 // pred_check
          %p233 = pneg %p38
        $region42: #{tpu_custom_call.1} parent=39 // pred_check_branch
          %235 = sbr.rel (%p233) target = $region44
        $region43: #{tpu_custom_call.1} parent=39 // pred_region
          %s236 = smul.u32 64, %s18
          %p237 = scmp.lt.s32.totalorder %s236, 127
          %s238 = scalar_select %p237, %s236, 127
          %s239 = smul.addr %s238, 8
          %s240 = scalar_lea.vmem %s0, %s239
          %s241 = smul.u32 64, %s18
        $region44: #{tpu_custom_call.1} parent=39 // pred_fallthru
          _
      $region40: #{tpu_custom_call.1} parent=5 // pred_fallthru
        _
      %p242 = scmp.le.s32.totalorder 1, %s18
      %p243 = scmp.lt.s32.totalorder %s18, 3
      %p244 = pnand %p242, %p243
      %p245 = pneg %p244
      // Predicated region
      $region45: #{tpu_custom_call.1} parent=5 // pred_check
        _
      $region46: #{tpu_custom_call.1} parent=5 // pred_check_branch
        %247 = sbr.rel (%p244) target = $region48
      $region47: #{tpu_custom_call.1} parent=5 // pred_region
        %s248 = ssub.s32 %s18, 1
        %s249 = smul.u32 64, %s23
        %p250 = scmp.lt.s32.totalorder %s249, 127
        %s251 = scalar_select %p250, %s249, 127
        %s252 = smul.addr %s251, 8
        %s253 = scalar_lea.vmem %s0, %s252
        %p254 = pneg %p44
        %p255 = pneg %p41
        %p256 = pneg %p65
        %p257 = pneg %p62
        %p258 = pneg %p86
        %p259 = pneg %p83
        %p260 = pneg %p107
        %p261 = pneg %p104
        %p262 = pneg %p128
        %p263 = pneg %p125
        %p264 = pneg %p149
        %p265 = pneg %p146
        %p266 = pneg %p170
        %p267 = pneg %p167
        %p268 = pneg %p196
        %p269 = pneg %p193
        %s270 = sand.u32 %s183, 1
        %s271 = scalar_lea.sflag [#allocation4], %s270
        %s272 = sand.u32 %s183, 1
        %s273 = smul.addr %s272, 4
        %s274 = scalar_lea.vmem [#allocation3], %s273
        %s275 = smul.u32 64, %s23
        %p276 = scmp.lt.s32.totalorder %s275, 127
        %s277 = scalar_select %p276, %s275, 127
        %s278 = smul.addr %s277, 8
        %s279 = scalar_lea.vmem %s0, %s278
        %s280 = smul.u32 64, %s23
        %s281 = smul.u32 4, %s23
        %v282 = vld [vmem:[%s279] sm:$0xff]
        %v283 = vld [vmem:[%s279 + $0x8] sm:$0xff]
        %v284 = vld [vmem:[%s279 + $0x10] sm:$0xff]
        %v285 = vld [vmem:[%s279 + $0x18] sm:$0xff]
        %v286 = vld [vmem:[%s279 + $0x20] sm:$0xff]
        %v287 = vld [vmem:[%s279 + $0x28] sm:$0xff]
        %v288 = vld [vmem:[%s279 + $0x30] sm:$0xff]
        %v289 = vld [vmem:[%s279 + $0x38] sm:$0xff]
        %v290 = vld [vmem:[%s279 + $0x40] sm:$0xff]
        %v291 = vld [vmem:[%s279 + $0x48] sm:$0xff]
        %v292 = vld [vmem:[%s279 + $0x50] sm:$0xff]
        %v293 = vld [vmem:[%s279 + $0x58] sm:$0xff]
        %v294 = vld [vmem:[%s279 + $0x60] sm:$0xff]
        %v295 = vld [vmem:[%s279 + $0x68] sm:$0xff]
        %v296 = vld [vmem:[%s279 + $0x70] sm:$0xff]
        %v297 = vld [vmem:[%s279 + $0x78] sm:$0xff]
        %v298 = vld [vmem:[%s279 + $0x80] sm:$0xff]
        %v299 = vld [vmem:[%s279 + $0x88] sm:$0xff]
        %v300 = vld [vmem:[%s279 + $0x90] sm:$0xff]
        %v301 = vld [vmem:[%s279 + $0x98] sm:$0xff]
        %v302 = vld [vmem:[%s279 + $0xa0] sm:$0xff]
        %v303 = vld [vmem:[%s279 + $0xa8] sm:$0xff]
        %v304 = vld [vmem:[%s279 + $0xb0] sm:$0xff]
        %v305 = vld [vmem:[%s279 + $0xb8] sm:$0xff]
        %v306 = vld [vmem:[%s279 + $0xc0] sm:$0xff]
        %v307 = vld [vmem:[%s279 + $0xc8] sm:$0xff]
        %v308 = vld [vmem:[%s279 + $0xd0] sm:$0xff]
        %v309 = vld [vmem:[%s279 + $0xd8] sm:$0xff]
        %v310 = vld [vmem:[%s279 + $0xe0] sm:$0xff]
        %v311 = vld [vmem:[%s279 + $0xe8] sm:$0xff]
        %v312 = vld [vmem:[%s279 + $0xf0] sm:$0xff]
        %v313 = vld [vmem:[%s279 + $0xf8] sm:$0xff]
        %v314 = vld [vmem:[%s279 + $0x100] sm:$0xff]
        %v315 = vld [vmem:[%s279 + $0x108] sm:$0xff]
        %v316 = vld [vmem:[%s279 + $0x110] sm:$0xff]
        %v317 = vld [vmem:[%s279 + $0x118] sm:$0xff]
        %v318 = vld [vmem:[%s279 + $0x120] sm:$0xff]
        %v319 = vld [vmem:[%s279 + $0x128] sm:$0xff]
        %v320 = vld [vmem:[%s279 + $0x130] sm:$0xff]
        %v321 = vld [vmem:[%s279 + $0x138] sm:$0xff]
        %v322 = vld [vmem:[%s279 + $0x140] sm:$0xff]
        %v323 = vld [vmem:[%s279 + $0x148] sm:$0xff]
        %v324 = vld [vmem:[%s279 + $0x150] sm:$0xff]
        %v325 = vld [vmem:[%s279 + $0x158] sm:$0xff]
        %v326 = vld [vmem:[%s279 + $0x160] sm:$0xff]
        %v327 = vld [vmem:[%s279 + $0x168] sm:$0xff]
        %v328 = vld [vmem:[%s279 + $0x170] sm:$0xff]
        %v329 = vld [vmem:[%s279 + $0x178] sm:$0xff]
        %v330 = vld [vmem:[%s279 + $0x180] sm:$0xff]
        %v331 = vld [vmem:[%s279 + $0x188] sm:$0xff]
        %v332 = vld [vmem:[%s279 + $0x190] sm:$0xff]
        %v333 = vld [vmem:[%s279 + $0x198] sm:$0xff]
        %v334 = vld [vmem:[%s279 + $0x1a0] sm:$0xff]
        %v335 = vld [vmem:[%s279 + $0x1a8] sm:$0xff]
        %v336 = vld [vmem:[%s279 + $0x1b0] sm:$0xff]
        %v337 = vld [vmem:[%s279 + $0x1b8] sm:$0xff]
        %v338 = vld [vmem:[%s279 + $0x1c0] sm:$0xff]
        %v339 = vld [vmem:[%s279 + $0x1c8] sm:$0xff]
        %v340 = vld [vmem:[%s279 + $0x1d0] sm:$0xff]
        %v341 = vld [vmem:[%s279 + $0x1d8] sm:$0xff]
        %v342 = vld [vmem:[%s279 + $0x1e0] sm:$0xff]
        %v343 = vld [vmem:[%s279 + $0x1e8] sm:$0xff]
        %v344 = vld [vmem:[%s279 + $0x1f0] sm:$0xff]
        %v345 = vld [vmem:[%s279 + $0x1f8] sm:$0xff]
        %v346 = vld [vmem:[%s1] sm:$0xff]
        %v347 = vld [vmem:[%s1 + $0x8] sm:$0xf]
        %v348 = vld [vmem:[%s2] sm:$0x1]
        %v350 = vlaneseq
        %v351 = vshrl.u32 %v350, 7
        %v352 = vsub.s32 0, %v351
        %v353 = vrot.slane %v348, %v352
        %vm355 = vcmask 97280
        %v357 = vsel %vm355, %v282, 0
        %v360 = vsel %vm355, %v283, 0
        %v363 = vsel %vm355, %v284, 0
        %v366 = vsel %vm355, %v285, 0
        %v369 = vsel %vm355, %v286, 0
        %v372 = vsel %vm355, %v287, 0
        %v375 = vsel %vm355, %v288, 0
        %v378 = vsel %vm355, %v289, 0
        %v381 = vsel %vm355, %v290, 0
        %v384 = vsel %vm355, %v291, 0
        %v387 = vsel %vm355, %v292, 0
        %v390 = vsel %vm355, %v293, 0
        %v393 = vsel %vm355, %v294, 0
        %v396 = vsel %vm355, %v295, 0
        %v399 = vsel %vm355, %v296, 0
        %v402 = vsel %vm355, %v297, 0
        %v405 = vsel %vm355, %v298, 0
        %v408 = vsel %vm355, %v299, 0
        %v411 = vsel %vm355, %v300, 0
        %v414 = vsel %vm355, %v301, 0
        %v417 = vsel %vm355, %v302, 0
        %v420 = vsel %vm355, %v303, 0
        %v423 = vsel %vm355, %v304, 0
        %v426 = vsel %vm355, %v305, 0
        %v429 = vsel %vm355, %v306, 0
        %v432 = vsel %vm355, %v307, 0
        %v435 = vsel %vm355, %v308, 0
        %v438 = vsel %vm355, %v309, 0
        %v441 = vsel %vm355, %v310, 0
        %v444 = vsel %vm355, %v311, 0
        %v447 = vsel %vm355, %v312, 0
        %v450 = vsel %vm355, %v313, 0
        %v453 = vsel %vm355, %v314, 0
        %v456 = vsel %vm355, %v315, 0
        %v459 = vsel %vm355, %v316, 0
        %v462 = vsel %vm355, %v317, 0
        %v465 = vsel %vm355, %v318, 0
        %v468 = vsel %vm355, %v319, 0
        %v471 = vsel %vm355, %v320, 0
        %v474 = vsel %vm355, %v321, 0
        %v477 = vsel %vm355, %v322, 0
        %v480 = vsel %vm355, %v323, 0
        %v483 = vsel %vm355, %v324, 0
        %v486 = vsel %vm355, %v325, 0
        %v489 = vsel %vm355, %v326, 0
        %v492 = vsel %vm355, %v327, 0
        %v495 = vsel %vm355, %v328, 0
        %v498 = vsel %vm355, %v329, 0
        %v501 = vsel %vm355, %v330, 0
        %v504 = vsel %vm355, %v331, 0
        %v507 = vsel %vm355, %v332, 0
        %v510 = vsel %vm355, %v333, 0
        %v513 = vsel %vm355, %v334, 0
        %v516 = vsel %vm355, %v335, 0
        %v519 = vsel %vm355, %v336, 0
        %v522 = vsel %vm355, %v337, 0
        %v525 = vsel %vm355, %v338, 0
        %v528 = vsel %vm355, %v339, 0
        %v531 = vsel %vm355, %v340, 0
        %v534 = vsel %vm355, %v341, 0
        %v537 = vsel %vm355, %v342, 0
        %v540 = vsel %vm355, %v343, 0
        %v543 = vsel %vm355, %v344, 0
        %v546 = vsel %vm355, %v345, 0
        %vm548 = vcmask 1043456
        %v550 = vsel %vm548, %v347, 0
        %552 = vmatprep.subr.mxu0 0.0
        %553 = vmatpush1.msra.mxu0 0.0
        %554 = vmatprep.subr.mxu0 0.0
        %555 = vmatpush1.msra.mxu0 0.0
        %556 = vmatprep.subr.mxu0 0.0
        %557 = vmatpush1.msra.mxu0 0.0
        %558 = vmatprep.subr.mxu0 0.0
        %559 = vmatpush1.msra.mxu0 0.0
        %560 = vmatprep.subr.mxu0 0.0
        %561 = vmatpush1.msra.mxu0 0.0
        %562 = vmatprep.subr.mxu0 0.0
        %563 = vmatpush1.msra.mxu0 0.0
        %564 = vmatprep.subr.mxu0 0.0
        %565 = vmatpush1.msra.mxu0 0.0
        %566 = vmatprep.subr.mxu0 0.0
        %567 = vmatpush1.msra.mxu0 0.0
        %568 = vmatprep.subr.mxu0 0.0
        %569 = vmatpush1.msra.mxu0 0.0
        %570 = vmatprep.subr.mxu0 0.0
        %571 = vmatpush1.msra.mxu0 0.0
        %572 = vmatprep.subr.mxu0 0.0
        %573 = vmatpush1.msra.mxu0 0.0
        %574 = vmatprep.subr.mxu0 0.0
        %575 = vmatpush1.msra.mxu0 0.0
        %576 = vmatprep.subr.mxu0 0.0
        %577 = vmatpush1.msra.mxu0 0.0
        %578 = vmatprep.subr.mxu0 0.0
        %579 = vmatpush1.msra.mxu0 0.0
        %580 = vmatprep.subr.mxu0 0.0
        %581 = vmatpush1.msra.mxu0 %v550
        %582 = vmatprep.subr.mxu0 0.0
        %583 = vmatpush1.msra.mxu0 %v346
        %584 = vmatprep.subr.mxu0 0.0
        %585 = vmatpush2.msra.mxu0 0.0
        %586 = vmatprep.subr.mxu0 0.0
        %587 = vmatpush2.msra.mxu0 0.0
        %588 = vmatprep.subr.mxu0 0.0
        %589 = vmatpush2.msra.mxu0 0.0
        %590 = vmatprep.subr.mxu0 0.0
        %591 = vmatpush2.msra.mxu0 0.0
        %592 = vmatprep.subr.mxu0 0.0
        %593 = vmatpush2.msra.mxu0 0.0
        %594 = vmatprep.subr.mxu0 0.0
        %595 = vmatpush2.msra.mxu0 0.0
        %596 = vmatprep.subr.mxu0 0.0
        %597 = vmatpush2.msra.mxu0 0.0
        %598 = vmatprep.subr.mxu0 0.0
        %599 = vmatpush2.msra.mxu0 0.0
        %600 = vmatprep.subr.mxu0 0.0
        %601 = vmatpush2.msra.mxu0 0.0
        %602 = vmatprep.subr.mxu0 0.0
        %603 = vmatpush2.msra.mxu0 0.0
        %604 = vmatprep.subr.mxu0 0.0
        %605 = vmatpush2.msra.mxu0 0.0
        %606 = vmatprep.subr.mxu0 0.0
        %607 = vmatpush2.msra.mxu0 0.0
        %608 = vmatprep.subr.mxu0 0.0
        %609 = vmatpush2.msra.mxu0 0.0
        %610 = vmatprep.subr.mxu0 0.0
        %611 = vmatpush2.msra.mxu0 0.0
        %612 = vmatprep.subr.mxu0 0.0
        %613 = vmatpush2.msra.mxu0 0.0
        %614 = vmatprep.subr.mxu0 0.0
        %615 = vmatpush2.msra.mxu0 0.0
        %616 = vmatprep.mubr.f32.mxu0 0.0
        %617 = vmatmul.mubr.f32.gmra.mxu0 %v357
        %v618 = vpop.f32.mrf.mxu0
        %v619 = vadd.f32 %v353, %v618
        %v620 = vpop.f32.mrf.mxu0
        %621 = vmatprep.mubr.f32.mxu0 0.0
        %622 = vmatmul.mubr.f32.gmra.mxu0 %v360
        %v623 = vpop.f32.mrf.mxu0
        %v624 = vadd.f32 %v353, %v623
        %v625 = vpop.f32.mrf.mxu0
        %626 = vmatprep.mubr.f32.mxu0 0.0
        %627 = vmatmul.mubr.f32.gmra.mxu0 %v363
        %v628 = vpop.f32.mrf.mxu0
        %v629 = vadd.f32 %v353, %v628
        %v630 = vpop.f32.mrf.mxu0
        %631 = vmatprep.mubr.f32.mxu0 0.0
        %632 = vmatmul.mubr.f32.gmra.mxu0 %v366
        %v633 = vpop.f32.mrf.mxu0
        %v634 = vadd.f32 %v353, %v633
        %v635 = vpop.f32.mrf.mxu0
        %636 = vmatprep.mubr.f32.mxu0 0.0
        %637 = vmatmul.mubr.f32.gmra.mxu0 %v369
        %v638 = vpop.f32.mrf.mxu0
        %v639 = vadd.f32 %v353, %v638
        %v640 = vpop.f32.mrf.mxu0
        %641 = vmatprep.mubr.f32.mxu0 0.0
        %642 = vmatmul.mubr.f32.gmra.mxu0 %v372
        %v643 = vpop.f32.mrf.mxu0
        %v644 = vadd.f32 %v353, %v643
        %v645 = vpop.f32.mrf.mxu0
        %646 = vmatprep.mubr.f32.mxu0 0.0
        %647 = vmatmul.mubr.f32.gmra.mxu0 %v375
        %v648 = vpop.f32.mrf.mxu0
        %v649 = vadd.f32 %v353, %v648
        %v650 = vpop.f32.mrf.mxu0
        %651 = vmatprep.mubr.f32.mxu0 0.0
        %652 = vmatmul.mubr.f32.gmra.mxu0 %v378
        %v653 = vpop.f32.mrf.mxu0
        %v654 = vadd.f32 %v353, %v653
        %v655 = vpop.f32.mrf.mxu0
        %656 = vmatprep.mubr.f32.mxu0 0.0
        %657 = vmatmul.mubr.f32.gmra.mxu0 %v381
        %v658 = vpop.f32.mrf.mxu0
        %v659 = vadd.f32 %v353, %v658
        %v660 = vpop.f32.mrf.mxu0
        %661 = vmatprep.mubr.f32.mxu0 0.0
        %662 = vmatmul.mubr.f32.gmra.mxu0 %v384
        %v663 = vpop.f32.mrf.mxu0
        %v664 = vadd.f32 %v353, %v663
        %v665 = vpop.f32.mrf.mxu0
        %666 = vmatprep.mubr.f32.mxu0 0.0
        %667 = vmatmul.mubr.f32.gmra.mxu0 %v387
        %v668 = vpop.f32.mrf.mxu0
        %v669 = vadd.f32 %v353, %v668
        %v670 = vpop.f32.mrf.mxu0
        %671 = vmatprep.mubr.f32.mxu0 0.0
        %672 = vmatmul.mubr.f32.gmra.mxu0 %v390
        %v673 = vpop.f32.mrf.mxu0
        %v674 = vadd.f32 %v353, %v673
        %v675 = vpop.f32.mrf.mxu0
        %676 = vmatprep.mubr.f32.mxu0 0.0
        %677 = vmatmul.mubr.f32.gmra.mxu0 %v393
        %v678 = vpop.f32.mrf.mxu0
        %v679 = vadd.f32 %v353, %v678
        %v680 = vpop.f32.mrf.mxu0
        %681 = vmatprep.mubr.f32.mxu0 0.0
        %682 = vmatmul.mubr.f32.gmra.mxu0 %v396
        %v683 = vpop.f32.mrf.mxu0
        %v684 = vadd.f32 %v353, %v683
        %v685 = vpop.f32.mrf.mxu0
        %686 = vmatprep.mubr.f32.mxu0 0.0
        %687 = vmatmul.mubr.f32.gmra.mxu0 %v399
        %v688 = vpop.f32.mrf.mxu0
        %v689 = vadd.f32 %v353, %v688
        %v690 = vpop.f32.mrf.mxu0
        %691 = vmatprep.mubr.f32.mxu0 0.0
        %692 = vmatmul.mubr.f32.gmra.mxu0 %v402
        %v693 = vpop.f32.mrf.mxu0
        %v694 = vadd.f32 %v353, %v693
        %v695 = vpop.f32.mrf.mxu0
        %696 = vmatprep.mubr.f32.mxu0 0.0
        %697 = vmatmul.mubr.f32.gmra.mxu0 %v405
        %v698 = vpop.f32.mrf.mxu0
        %v699 = vadd.f32 %v353, %v698
        %v700 = vpop.f32.mrf.mxu0
        %701 = vmatprep.mubr.f32.mxu0 0.0
        %702 = vmatmul.mubr.f32.gmra.mxu0 %v408
        %v703 = vpop.f32.mrf.mxu0
        %v704 = vadd.f32 %v353, %v703
        %v705 = vpop.f32.mrf.mxu0
        %706 = vmatprep.mubr.f32.mxu0 0.0
        %707 = vmatmul.mubr.f32.gmra.mxu0 %v411
        %v708 = vpop.f32.mrf.mxu0
        %v709 = vadd.f32 %v353, %v708
        %v710 = vpop.f32.mrf.mxu0
        %711 = vmatprep.mubr.f32.mxu0 0.0
        %712 = vmatmul.mubr.f32.gmra.mxu0 %v414
        %v713 = vpop.f32.mrf.mxu0
        %v714 = vadd.f32 %v353, %v713
        %v715 = vpop.f32.mrf.mxu0
        %716 = vmatprep.mubr.f32.mxu0 0.0
        %717 = vmatmul.mubr.f32.gmra.mxu0 %v417
        %v718 = vpop.f32.mrf.mxu0
        %v719 = vadd.f32 %v353, %v718
        %v720 = vpop.f32.mrf.mxu0
        %721 = vmatprep.mubr.f32.mxu0 0.0
        %722 = vmatmul.mubr.f32.gmra.mxu0 %v420
        %v723 = vpop.f32.mrf.mxu0
        %v724 = vadd.f32 %v353, %v723
        %v725 = vpop.f32.mrf.mxu0
        %726 = vmatprep.mubr.f32.mxu0 0.0
        %727 = vmatmul.mubr.f32.gmra.mxu0 %v423
        %v728 = vpop.f32.mrf.mxu0
        %v729 = vadd.f32 %v353, %v728
        %v730 = vpop.f32.mrf.mxu0
        %731 = vmatprep.mubr.f32.mxu0 0.0
        %732 = vmatmul.mubr.f32.gmra.mxu0 %v426
        %v733 = vpop.f32.mrf.mxu0
        %v734 = vadd.f32 %v353, %v733
        %v735 = vpop.f32.mrf.mxu0
        %736 = vmatprep.mubr.f32.mxu0 0.0
        %737 = vmatmul.mubr.f32.gmra.mxu0 %v429
        %v738 = vpop.f32.mrf.mxu0
        %v739 = vadd.f32 %v353, %v738
        %v740 = vpop.f32.mrf.mxu0
        %741 = vmatprep.mubr.f32.mxu0 0.0
        %742 = vmatmul.mubr.f32.gmra.mxu0 %v432
        %v743 = vpop.f32.mrf.mxu0
        %v744 = vadd.f32 %v353, %v743
        %v745 = vpop.f32.mrf.mxu0
        %746 = vmatprep.mubr.f32.mxu0 0.0
        %747 = vmatmul.mubr.f32.gmra.mxu0 %v435
        %v748 = vpop.f32.mrf.mxu0
        %v749 = vadd.f32 %v353, %v748
        %v750 = vpop.f32.mrf.mxu0
        %751 = vmatprep.mubr.f32.mxu0 0.0
        %752 = vmatmul.mubr.f32.gmra.mxu0 %v438
        %v753 = vpop.f32.mrf.mxu0
        %v754 = vadd.f32 %v353, %v753
        %v755 = vpop.f32.mrf.mxu0
        %756 = vmatprep.mubr.f32.mxu0 0.0
        %757 = vmatmul.mubr.f32.gmra.mxu0 %v441
        %v758 = vpop.f32.mrf.mxu0
        %v759 = vadd.f32 %v353, %v758
        %v760 = vpop.f32.mrf.mxu0
        %761 = vmatprep.mubr.f32.mxu0 0.0
        %762 = vmatmul.mubr.f32.gmra.mxu0 %v444
        %v763 = vpop.f32.mrf.mxu0
        %v764 = vadd.f32 %v353, %v763
        %v765 = vpop.f32.mrf.mxu0
        %766 = vmatprep.mubr.f32.mxu0 0.0
        %767 = vmatmul.mubr.f32.gmra.mxu0 %v447
        %v768 = vpop.f32.mrf.mxu0
        %v769 = vadd.f32 %v353, %v768
        %v770 = vpop.f32.mrf.mxu0
        %771 = vmatprep.mubr.f32.mxu0 0.0
        %772 = vmatmul.mubr.f32.gmra.mxu0 %v450
        %v773 = vpop.f32.mrf.mxu0
        %v774 = vadd.f32 %v353, %v773
        %v775 = vpop.f32.mrf.mxu0
        %776 = vmatprep.mubr.f32.mxu0 0.0
        %777 = vmatmul.mubr.f32.gmra.mxu0 %v453
        %v778 = vpop.f32.mrf.mxu0
        %v779 = vadd.f32 %v353, %v778
        %v780 = vpop.f32.mrf.mxu0
        %781 = vmatprep.mubr.f32.mxu0 0.0
        %782 = vmatmul.mubr.f32.gmra.mxu0 %v456
        %v783 = vpop.f32.mrf.mxu0
        %v784 = vadd.f32 %v353, %v783
        %v785 = vpop.f32.mrf.mxu0
        %786 = vmatprep.mubr.f32.mxu0 0.0
        %787 = vmatmul.mubr.f32.gmra.mxu0 %v459
        %v788 = vpop.f32.mrf.mxu0
        %v789 = vadd.f32 %v353, %v788
        %v790 = vpop.f32.mrf.mxu0
        %791 = vmatprep.mubr.f32.mxu0 0.0
        %792 = vmatmul.mubr.f32.gmra.mxu0 %v462
        %v793 = vpop.f32.mrf.mxu0
        %v794 = vadd.f32 %v353, %v793
        %v795 = vpop.f32.mrf.mxu0
        %796 = vmatprep.mubr.f32.mxu0 0.0
        %797 = vmatmul.mubr.f32.gmra.mxu0 %v465
        %v798 = vpop.f32.mrf.mxu0
        %v799 = vadd.f32 %v353, %v798
        %v800 = vpop.f32.mrf.mxu0
        %801 = vmatprep.mubr.f32.mxu0 0.0
        %802 = vmatmul.mubr.f32.gmra.mxu0 %v468
        %v803 = vpop.f32.mrf.mxu0
        %v804 = vadd.f32 %v353, %v803
        %v805 = vpop.f32.mrf.mxu0
        %806 = vmatprep.mubr.f32.mxu0 0.0
        %807 = vmatmul.mubr.f32.gmra.mxu0 %v471
        %v808 = vpop.f32.mrf.mxu0
        %v809 = vadd.f32 %v353, %v808
        %v810 = vpop.f32.mrf.mxu0
        %811 = vmatprep.mubr.f32.mxu0 0.0
        %812 = vmatmul.mubr.f32.gmra.mxu0 %v474
        %v813 = vpop.f32.mrf.mxu0
        %v814 = vadd.f32 %v353, %v813
        %v815 = vpop.f32.mrf.mxu0
        %816 = vmatprep.mubr.f32.mxu0 0.0
        %817 = vmatmul.mubr.f32.gmra.mxu0 %v477
        %v818 = vpop.f32.mrf.mxu0
        %v819 = vadd.f32 %v353, %v818
        %v820 = vpop.f32.mrf.mxu0
        %821 = vmatprep.mubr.f32.mxu0 0.0
        %822 = vmatmul.mubr.f32.gmra.mxu0 %v480
        %v823 = vpop.f32.mrf.mxu0
        %v824 = vadd.f32 %v353, %v823
        %v825 = vpop.f32.mrf.mxu0
        %826 = vmatprep.mubr.f32.mxu0 0.0
        %827 = vmatmul.mubr.f32.gmra.mxu0 %v483
        %v828 = vpop.f32.mrf.mxu0
        %v829 = vadd.f32 %v353, %v828
        %v830 = vpop.f32.mrf.mxu0
        %831 = vmatprep.mubr.f32.mxu0 0.0
        %832 = vmatmul.mubr.f32.gmra.mxu0 %v486
        %v833 = vpop.f32.mrf.mxu0
        %v834 = vadd.f32 %v353, %v833
        %v835 = vpop.f32.mrf.mxu0
        %836 = vmatprep.mubr.f32.mxu0 0.0
        %837 = vmatmul.mubr.f32.gmra.mxu0 %v489
        %v838 = vpop.f32.mrf.mxu0
        %v839 = vadd.f32 %v353, %v838
        %v840 = vpop.f32.mrf.mxu0
        %841 = vmatprep.mubr.f32.mxu0 0.0
        %842 = vmatmul.mubr.f32.gmra.mxu0 %v492
        %v843 = vpop.f32.mrf.mxu0
        %v844 = vadd.f32 %v353, %v843
        %v845 = vpop.f32.mrf.mxu0
        %846 = vmatprep.mubr.f32.mxu0 0.0
        %847 = vmatmul.mubr.f32.gmra.mxu0 %v495
        %v848 = vpop.f32.mrf.mxu0
        %v849 = vadd.f32 %v353, %v848
        %v850 = vpop.f32.mrf.mxu0
        %851 = vmatprep.mubr.f32.mxu0 0.0
        %852 = vmatmul.mubr.f32.gmra.mxu0 %v498
        %v853 = vpop.f32.mrf.mxu0
        %v854 = vadd.f32 %v353, %v853
        %v855 = vpop.f32.mrf.mxu0
        %856 = vmatprep.mubr.f32.mxu0 0.0
        %857 = vmatmul.mubr.f32.gmra.mxu0 %v501
        %v858 = vpop.f32.mrf.mxu0
        %v859 = vadd.f32 %v353, %v858
        %v860 = vpop.f32.mrf.mxu0
        %861 = vmatprep.mubr.f32.mxu0 0.0
        %862 = vmatmul.mubr.f32.gmra.mxu0 %v504
        %v863 = vpop.f32.mrf.mxu0
        %v864 = vadd.f32 %v353, %v863
        %v865 = vpop.f32.mrf.mxu0
        %866 = vmatprep.mubr.f32.mxu0 0.0
        %867 = vmatmul.mubr.f32.gmra.mxu0 %v507
        %v868 = vpop.f32.mrf.mxu0
        %v869 = vadd.f32 %v353, %v868
        %v870 = vpop.f32.mrf.mxu0
        %871 = vmatprep.mubr.f32.mxu0 0.0
        %872 = vmatmul.mubr.f32.gmra.mxu0 %v510
        %v873 = vpop.f32.mrf.mxu0
        %v874 = vadd.f32 %v353, %v873
        %v875 = vpop.f32.mrf.mxu0
        %876 = vmatprep.mubr.f32.mxu0 0.0
        %877 = vmatmul.mubr.f32.gmra.mxu0 %v513
        %v878 = vpop.f32.mrf.mxu0
        %v879 = vadd.f32 %v353, %v878
        %v880 = vpop.f32.mrf.mxu0
        %881 = vmatprep.mubr.f32.mxu0 0.0
        %882 = vmatmul.mubr.f32.gmra.mxu0 %v516
        %v883 = vpop.f32.mrf.mxu0
        %v884 = vadd.f32 %v353, %v883
        %v885 = vpop.f32.mrf.mxu0
        %886 = vmatprep.mubr.f32.mxu0 0.0
        %887 = vmatmul.mubr.f32.gmra.mxu0 %v519
        %v888 = vpop.f32.mrf.mxu0
        %v889 = vadd.f32 %v353, %v888
        %v890 = vpop.f32.mrf.mxu0
        %891 = vmatprep.mubr.f32.mxu0 0.0
        %892 = vmatmul.mubr.f32.gmra.mxu0 %v522
        %v893 = vpop.f32.mrf.mxu0
        %v894 = vadd.f32 %v353, %v893
        %v895 = vpop.f32.mrf.mxu0
        %896 = vmatprep.mubr.f32.mxu0 0.0
        %897 = vmatmul.mubr.f32.gmra.mxu0 %v525
        %v898 = vpop.f32.mrf.mxu0
        %v899 = vadd.f32 %v353, %v898
        %v900 = vpop.f32.mrf.mxu0
        %901 = vmatprep.mubr.f32.mxu0 0.0
        %902 = vmatmul.mubr.f32.gmra.mxu0 %v528
        %v903 = vpop.f32.mrf.mxu0
        %v904 = vadd.f32 %v353, %v903
        %v905 = vpop.f32.mrf.mxu0
        %906 = vmatprep.mubr.f32.mxu0 0.0
        %907 = vmatmul.mubr.f32.gmra.mxu0 %v531
        %v908 = vpop.f32.mrf.mxu0
        %v909 = vadd.f32 %v353, %v908
        %v910 = vpop.f32.mrf.mxu0
        %911 = vmatprep.mubr.f32.mxu0 0.0
        %912 = vmatmul.mubr.f32.gmra.mxu0 %v534
        %v913 = vpop.f32.mrf.mxu0
        %v914 = vadd.f32 %v353, %v913
        %v915 = vpop.f32.mrf.mxu0
        %916 = vmatprep.mubr.f32.mxu0 0.0
        %917 = vmatmul.mubr.f32.gmra.mxu0 %v537
        %v918 = vpop.f32.mrf.mxu0
        %v919 = vadd.f32 %v353, %v918
        %v920 = vpop.f32.mrf.mxu0
        %921 = vmatprep.mubr.f32.mxu0 0.0
        %922 = vmatmul.mubr.f32.gmra.mxu0 %v540
        %v923 = vpop.f32.mrf.mxu0
        %v924 = vadd.f32 %v353, %v923
        %v925 = vpop.f32.mrf.mxu0
        %926 = vmatprep.mubr.f32.mxu0 0.0
        %927 = vmatmul.mubr.f32.gmra.mxu0 %v543
        %v928 = vpop.f32.mrf.mxu0
        %v929 = vadd.f32 %v353, %v928
        %v930 = vpop.f32.mrf.mxu0
        %931 = vmatprep.mubr.f32.mxu0 0.0
        %932 = vmatmul.mubr.f32.gmra.mxu0 %v546
        %v933 = vpop.f32.mrf.mxu0
        %v934 = vadd.f32 %v353, %v933
        %v935 = vpop.f32.mrf.mxu0
        %936 = vdwg.mxu0
        %v937 = vmax.f32 %v619, 0.0
        %v938 = vmax.f32 %v624, 0.0
        %v939 = vmax.f32 %v629, 0.0
        %v940 = vmax.f32 %v634, 0.0
        %v941 = vmax.f32 %v639, 0.0
        %v942 = vmax.f32 %v644, 0.0
        %v943 = vmax.f32 %v649, 0.0
        %v944 = vmax.f32 %v654, 0.0
        %v945 = vmax.f32 %v659, 0.0
        %v946 = vmax.f32 %v664, 0.0
        %v947 = vmax.f32 %v669, 0.0
        %v948 = vmax.f32 %v674, 0.0
        %v949 = vmax.f32 %v679, 0.0
        %v950 = vmax.f32 %v684, 0.0
        %v951 = vmax.f32 %v689, 0.0
        %v952 = vmax.f32 %v694, 0.0
        %v953 = vmax.f32 %v699, 0.0
        %v954 = vmax.f32 %v704, 0.0
        %v955 = vmax.f32 %v709, 0.0
        %v956 = vmax.f32 %v714, 0.0
        %v957 = vmax.f32 %v719, 0.0
        %v958 = vmax.f32 %v724, 0.0
        %v959 = vmax.f32 %v729, 0.0
        %v960 = vmax.f32 %v734, 0.0
        %v961 = vmax.f32 %v739, 0.0
        %v962 = vmax.f32 %v744, 0.0
        %v963 = vmax.f32 %v749, 0.0
        %v964 = vmax.f32 %v754, 0.0
        %v965 = vmax.f32 %v759, 0.0
        %v966 = vmax.f32 %v764, 0.0
        %v967 = vmax.f32 %v769, 0.0
        %v968 = vmax.f32 %v774, 0.0
        %v969 = vmax.f32 %v779, 0.0
        %v970 = vmax.f32 %v784, 0.0
        %v971 = vmax.f32 %v789, 0.0
        %v972 = vmax.f32 %v794, 0.0
        %v973 = vmax.f32 %v799, 0.0
        %v974 = vmax.f32 %v804, 0.0
        %v975 = vmax.f32 %v809, 0.0
        %v976 = vmax.f32 %v814, 0.0
        %v977 = vmax.f32 %v819, 0.0
        %v978 = vmax.f32 %v824, 0.0
        %v979 = vmax.f32 %v829, 0.0
        %v980 = vmax.f32 %v834, 0.0
        %v981 = vmax.f32 %v839, 0.0
        %v982 = vmax.f32 %v844, 0.0
        %v983 = vmax.f32 %v849, 0.0
        %v984 = vmax.f32 %v854, 0.0
        %v985 = vmax.f32 %v859, 0.0
        %v986 = vmax.f32 %v864, 0.0
        %v987 = vmax.f32 %v869, 0.0
        %v988 = vmax.f32 %v874, 0.0
        %v989 = vmax.f32 %v879, 0.0
        %v990 = vmax.f32 %v884, 0.0
        %v991 = vmax.f32 %v889, 0.0
        %v992 = vmax.f32 %v894, 0.0
        %v993 = vmax.f32 %v899, 0.0
        %v994 = vmax.f32 %v904, 0.0
        %v995 = vmax.f32 %v909, 0.0
        %v996 = vmax.f32 %v914, 0.0
        %v997 = vmax.f32 %v919, 0.0
        %v998 = vmax.f32 %v924, 0.0
        %v999 = vmax.f32 %v929, 0.0
        %v1000 = vmax.f32 %v934, 0.0
        %v1001 = vld [vmem:[%s3] sm:$0xff]
        %v1002 = vld [vmem:[%s3 + $0x8] sm:$0xff]
        %v1003 = vld [vmem:[%s4] sm:$0x1]
        %v1005 = vlaneseq
        %v1006 = vshrl.u32 %v1005, 7
        %v1007 = vsub.s32 0, %v1006
        %v1008 = vrot.slane %v1003, %v1007
        %vm1010 = vcmask 130048
        %v1012 = vsel %vm1010, %v937, 0
        %v1015 = vsel %vm1010, %v938, 0
        %v1018 = vsel %vm1010, %v939, 0
        %v1021 = vsel %vm1010, %v940, 0
        %v1024 = vsel %vm1010, %v941, 0
        %v1027 = vsel %vm1010, %v942, 0
        %v1030 = vsel %vm1010, %v943, 0
        %v1033 = vsel %vm1010, %v944, 0
        %v1036 = vsel %vm1010, %v945, 0
        %v1039 = vsel %vm1010, %v946, 0
        %v1042 = vsel %vm1010, %v947, 0
        %v1045 = vsel %vm1010, %v948, 0
        %v1048 = vsel %vm1010, %v949, 0
        %v1051 = vsel %vm1010, %v950, 0
        %v1054 = vsel %vm1010, %v951, 0
        %v1057 = vsel %vm1010, %v952, 0
        %v1060 = vsel %vm1010, %v953, 0
        %v1063 = vsel %vm1010, %v954, 0
        %v1066 = vsel %vm1010, %v955, 0
        %v1069 = vsel %vm1010, %v956, 0
        %v1072 = vsel %vm1010, %v957, 0
        %v1075 = vsel %vm1010, %v958, 0
        %v1078 = vsel %vm1010, %v959, 0
        %v1081 = vsel %vm1010, %v960, 0
        %v1084 = vsel %vm1010, %v961, 0
        %v1087 = vsel %vm1010, %v962, 0
        %v1090 = vsel %vm1010, %v963, 0
        %v1093 = vsel %vm1010, %v964, 0
        %v1096 = vsel %vm1010, %v965, 0
        %v1099 = vsel %vm1010, %v966, 0
        %v1102 = vsel %vm1010, %v967, 0
        %v1105 = vsel %vm1010, %v968, 0
        %v1108 = vsel %vm1010, %v969, 0
        %v1111 = vsel %vm1010, %v970, 0
        %v1114 = vsel %vm1010, %v971, 0
        %v1117 = vsel %vm1010, %v972, 0
        %v1120 = vsel %vm1010, %v973, 0
        %v1123 = vsel %vm1010, %v974, 0
        %v1126 = vsel %vm1010, %v975, 0
        %v1129 = vsel %vm1010, %v976, 0
        %v1132 = vsel %vm1010, %v977, 0
        %v1135 = vsel %vm1010, %v978, 0
        %v1138 = vsel %vm1010, %v979, 0
        %v1141 = vsel %vm1010, %v980, 0
        %v1144 = vsel %vm1010, %v981, 0
        %v1147 = vsel %vm1010, %v982, 0
        %v1150 = vsel %vm1010, %v983, 0
        %v1153 = vsel %vm1010, %v984, 0
        %v1156 = vsel %vm1010, %v985, 0
        %v1159 = vsel %vm1010, %v986, 0
        %v1162 = vsel %vm1010, %v987, 0
        %v1165 = vsel %vm1010, %v988, 0
        %v1168 = vsel %vm1010, %v989, 0
        %v1171 = vsel %vm1010, %v990, 0
        %v1174 = vsel %vm1010, %v991, 0
        %v1177 = vsel %vm1010, %v992, 0
        %v1180 = vsel %vm1010, %v993, 0
        %v1183 = vsel %vm1010, %v994, 0
        %v1186 = vsel %vm1010, %v995, 0
        %v1189 = vsel %vm1010, %v996, 0
        %v1192 = vsel %vm1010, %v997, 0
        %v1195 = vsel %vm1010, %v998, 0
        %v1198 = vsel %vm1010, %v999, 0
        %v1201 = vsel %vm1010, %v1000, 0
        %1203 = vmatprep.subr.mxu0 0.0
        %1204 = vmatpush1.msra.mxu0 0.0
        %1205 = vmatprep.subr.mxu0 0.0
        %1206 = vmatpush1.msra.mxu0 0.0
        %1207 = vmatprep.subr.mxu0 0.0
        %1208 = vmatpush1.msra.mxu0 0.0
        %1209 = vmatprep.subr.mxu0 0.0
        %1210 = vmatpush1.msra.mxu0 0.0
        %1211 = vmatprep.subr.mxu0 0.0
        %1212 = vmatpush1.msra.mxu0 0.0
        %1213 = vmatprep.subr.mxu0 0.0
        %1214 = vmatpush1.msra.mxu0 0.0
        %1215 = vmatprep.subr.mxu0 0.0
        %1216 = vmatpush1.msra.mxu0 0.0
        %1217 = vmatprep.subr.mxu0 0.0
        %1218 = vmatpush1.msra.mxu0 0.0
        %1219 = vmatprep.subr.mxu0 0.0
        %1220 = vmatpush1.msra.mxu0 0.0
        %1221 = vmatprep.subr.mxu0 0.0
        %1222 = vmatpush1.msra.mxu0 0.0
        %1223 = vmatprep.subr.mxu0 0.0
        %1224 = vmatpush1.msra.mxu0 0.0
        %1225 = vmatprep.subr.mxu0 0.0
        %1226 = vmatpush1.msra.mxu0 0.0
        %1227 = vmatprep.subr.mxu0 0.0
        %1228 = vmatpush1.msra.mxu0 0.0
        %1229 = vmatprep.subr.mxu0 0.0
        %1230 = vmatpush1.msra.mxu0 0.0
        %1231 = vmatprep.subr.mxu0 0.0
        %1232 = vmatpush1.msra.mxu0 %v1002
        %1233 = vmatprep.subr.mxu0 0.0
        %1234 = vmatpush1.msra.mxu0 %v1001
        %1235 = vmatprep.subr.mxu0 0.0
        %1236 = vmatpush2.msra.mxu0 0.0
        %1237 = vmatprep.subr.mxu0 0.0
        %1238 = vmatpush2.msra.mxu0 0.0
        %1239 = vmatprep.subr.mxu0 0.0
        %1240 = vmatpush2.msra.mxu0 0.0
        %1241 = vmatprep.subr.mxu0 0.0
        %1242 = vmatpush2.msra.mxu0 0.0
        %1243 = vmatprep.subr.mxu0 0.0
        %1244 = vmatpush2.msra.mxu0 0.0
        %1245 = vmatprep.subr.mxu0 0.0
        %1246 = vmatpush2.msra.mxu0 0.0
        %1247 = vmatprep.subr.mxu0 0.0
        %1248 = vmatpush2.msra.mxu0 0.0
        %1249 = vmatprep.subr.mxu0 0.0
        %1250 = vmatpush2.msra.mxu0 0.0
        %1251 = vmatprep.subr.mxu0 0.0
        %1252 = vmatpush2.msra.mxu0 0.0
        %1253 = vmatprep.subr.mxu0 0.0
        %1254 = vmatpush2.msra.mxu0 0.0
        %1255 = vmatprep.subr.mxu0 0.0
        %1256 = vmatpush2.msra.mxu0 0.0
        %1257 = vmatprep.subr.mxu0 0.0
        %1258 = vmatpush2.msra.mxu0 0.0
        %1259 = vmatprep.subr.mxu0 0.0
        %1260 = vmatpush2.msra.mxu0 0.0
        %1261 = vmatprep.subr.mxu0 0.0
        %1262 = vmatpush2.msra.mxu0 0.0
        %1263 = vmatprep.subr.mxu0 0.0
        %1264 = vmatpush2.msra.mxu0 0.0
        %1265 = vmatprep.subr.mxu0 0.0
        %1266 = vmatpush2.msra.mxu0 0.0
        %1267 = vmatprep.mubr.f32.mxu0 0.0
        %1268 = vmatmul.mubr.f32.gmra.mxu0 %v1012
        %v1269 = vpop.f32.mrf.mxu0
        %v1270 = vadd.f32 %v1008, %v1269
        %v1271 = vpop.f32.mrf.mxu0
        %1272 = vmatprep.mubr.f32.mxu0 0.0
        %1273 = vmatmul.mubr.f32.gmra.mxu0 %v1015
        %v1274 = vpop.f32.mrf.mxu0
        %v1275 = vadd.f32 %v1008, %v1274
        %v1276 = vpop.f32.mrf.mxu0
        %1277 = vmatprep.mubr.f32.mxu0 0.0
        %1278 = vmatmul.mubr.f32.gmra.mxu0 %v1018
        %v1279 = vpop.f32.mrf.mxu0
        %v1280 = vadd.f32 %v1008, %v1279
        %v1281 = vpop.f32.mrf.mxu0
        %1282 = vmatprep.mubr.f32.mxu0 0.0
        %1283 = vmatmul.mubr.f32.gmra.mxu0 %v1021
        %v1284 = vpop.f32.mrf.mxu0
        %v1285 = vadd.f32 %v1008, %v1284
        %v1286 = vpop.f32.mrf.mxu0
        %1287 = vmatprep.mubr.f32.mxu0 0.0
        %1288 = vmatmul.mubr.f32.gmra.mxu0 %v1024
        %v1289 = vpop.f32.mrf.mxu0
        %v1290 = vadd.f32 %v1008, %v1289
        %v1291 = vpop.f32.mrf.mxu0
        %1292 = vmatprep.mubr.f32.mxu0 0.0
        %1293 = vmatmul.mubr.f32.gmra.mxu0 %v1027
        %v1294 = vpop.f32.mrf.mxu0
        %v1295 = vadd.f32 %v1008, %v1294
        %v1296 = vpop.f32.mrf.mxu0
        %1297 = vmatprep.mubr.f32.mxu0 0.0
        %1298 = vmatmul.mubr.f32.gmra.mxu0 %v1030
        %v1299 = vpop.f32.mrf.mxu0
        %v1300 = vadd.f32 %v1008, %v1299
        %v1301 = vpop.f32.mrf.mxu0
        %1302 = vmatprep.mubr.f32.mxu0 0.0
        %1303 = vmatmul.mubr.f32.gmra.mxu0 %v1033
        %v1304 = vpop.f32.mrf.mxu0
        %v1305 = vadd.f32 %v1008, %v1304
        %v1306 = vpop.f32.mrf.mxu0
        %1307 = vmatprep.mubr.f32.mxu0 0.0
        %1308 = vmatmul.mubr.f32.gmra.mxu0 %v1036
        %v1309 = vpop.f32.mrf.mxu0
        %v1310 = vadd.f32 %v1008, %v1309
        %v1311 = vpop.f32.mrf.mxu0
        %1312 = vmatprep.mubr.f32.mxu0 0.0
        %1313 = vmatmul.mubr.f32.gmra.mxu0 %v1039
        %v1314 = vpop.f32.mrf.mxu0
        %v1315 = vadd.f32 %v1008, %v1314
        %v1316 = vpop.f32.mrf.mxu0
        %1317 = vmatprep.mubr.f32.mxu0 0.0
        %1318 = vmatmul.mubr.f32.gmra.mxu0 %v1042
        %v1319 = vpop.f32.mrf.mxu0
        %v1320 = vadd.f32 %v1008, %v1319
        %v1321 = vpop.f32.mrf.mxu0
        %1322 = vmatprep.mubr.f32.mxu0 0.0
        %1323 = vmatmul.mubr.f32.gmra.mxu0 %v1045
        %v1324 = vpop.f32.mrf.mxu0
        %v1325 = vadd.f32 %v1008, %v1324
        %v1326 = vpop.f32.mrf.mxu0
        %1327 = vmatprep.mubr.f32.mxu0 0.0
        %1328 = vmatmul.mubr.f32.gmra.mxu0 %v1048
        %v1329 = vpop.f32.mrf.mxu0
        %v1330 = vadd.f32 %v1008, %v1329
        %v1331 = vpop.f32.mrf.mxu0
        %1332 = vmatprep.mubr.f32.mxu0 0.0
        %1333 = vmatmul.mubr.f32.gmra.mxu0 %v1051
        %v1334 = vpop.f32.mrf.mxu0
        %v1335 = vadd.f32 %v1008, %v1334
        %v1336 = vpop.f32.mrf.mxu0
        %1337 = vmatprep.mubr.f32.mxu0 0.0
        %1338 = vmatmul.mubr.f32.gmra.mxu0 %v1054
        %v1339 = vpop.f32.mrf.mxu0
        %v1340 = vadd.f32 %v1008, %v1339
        %v1341 = vpop.f32.mrf.mxu0
        %1342 = vmatprep.mubr.f32.mxu0 0.0
        %1343 = vmatmul.mubr.f32.gmra.mxu0 %v1057
        %v1344 = vpop.f32.mrf.mxu0
        %v1345 = vadd.f32 %v1008, %v1344
        %v1346 = vpop.f32.mrf.mxu0
        %1347 = vmatprep.mubr.f32.mxu0 0.0
        %1348 = vmatmul.mubr.f32.gmra.mxu0 %v1060
        %v1349 = vpop.f32.mrf.mxu0
        %v1350 = vadd.f32 %v1008, %v1349
        %v1351 = vpop.f32.mrf.mxu0
        %1352 = vmatprep.mubr.f32.mxu0 0.0
        %1353 = vmatmul.mubr.f32.gmra.mxu0 %v1063
        %v1354 = vpop.f32.mrf.mxu0
        %v1355 = vadd.f32 %v1008, %v1354
        %v1356 = vpop.f32.mrf.mxu0
        %1357 = vmatprep.mubr.f32.mxu0 0.0
        %1358 = vmatmul.mubr.f32.gmra.mxu0 %v1066
        %v1359 = vpop.f32.mrf.mxu0
        %v1360 = vadd.f32 %v1008, %v1359
        %v1361 = vpop.f32.mrf.mxu0
        %1362 = vmatprep.mubr.f32.mxu0 0.0
        %1363 = vmatmul.mubr.f32.gmra.mxu0 %v1069
        %v1364 = vpop.f32.mrf.mxu0
        %v1365 = vadd.f32 %v1008, %v1364
        %v1366 = vpop.f32.mrf.mxu0
        %1367 = vmatprep.mubr.f32.mxu0 0.0
        %1368 = vmatmul.mubr.f32.gmra.mxu0 %v1072
        %v1369 = vpop.f32.mrf.mxu0
        %v1370 = vadd.f32 %v1008, %v1369
        %v1371 = vpop.f32.mrf.mxu0
        %1372 = vmatprep.mubr.f32.mxu0 0.0
        %1373 = vmatmul.mubr.f32.gmra.mxu0 %v1075
        %v1374 = vpop.f32.mrf.mxu0
        %v1375 = vadd.f32 %v1008, %v1374
        %v1376 = vpop.f32.mrf.mxu0
        %1377 = vmatprep.mubr.f32.mxu0 0.0
        %1378 = vmatmul.mubr.f32.gmra.mxu0 %v1078
        %v1379 = vpop.f32.mrf.mxu0
        %v1380 = vadd.f32 %v1008, %v1379
        %v1381 = vpop.f32.mrf.mxu0
        %1382 = vmatprep.mubr.f32.mxu0 0.0
        %1383 = vmatmul.mubr.f32.gmra.mxu0 %v1081
        %v1384 = vpop.f32.mrf.mxu0
        %v1385 = vadd.f32 %v1008, %v1384
        %v1386 = vpop.f32.mrf.mxu0
        %1387 = vmatprep.mubr.f32.mxu0 0.0
        %1388 = vmatmul.mubr.f32.gmra.mxu0 %v1084
        %v1389 = vpop.f32.mrf.mxu0
        %v1390 = vadd.f32 %v1008, %v1389
        %v1391 = vpop.f32.mrf.mxu0
        %1392 = vmatprep.mubr.f32.mxu0 0.0
        %1393 = vmatmul.mubr.f32.gmra.mxu0 %v1087
        %v1394 = vpop.f32.mrf.mxu0
        %v1395 = vadd.f32 %v1008, %v1394
        %v1396 = vpop.f32.mrf.mxu0
        %1397 = vmatprep.mubr.f32.mxu0 0.0
        %1398 = vmatmul.mubr.f32.gmra.mxu0 %v1090
        %v1399 = vpop.f32.mrf.mxu0
        %v1400 = vadd.f32 %v1008, %v1399
        %v1401 = vpop.f32.mrf.mxu0
        %1402 = vmatprep.mubr.f32.mxu0 0.0
        %1403 = vmatmul.mubr.f32.gmra.mxu0 %v1093
        %v1404 = vpop.f32.mrf.mxu0
        %v1405 = vadd.f32 %v1008, %v1404
        %v1406 = vpop.f32.mrf.mxu0
        %1407 = vmatprep.mubr.f32.mxu0 0.0
        %1408 = vmatmul.mubr.f32.gmra.mxu0 %v1096
        %v1409 = vpop.f32.mrf.mxu0
        %v1410 = vadd.f32 %v1008, %v1409
        %v1411 = vpop.f32.mrf.mxu0
        %1412 = vmatprep.mubr.f32.mxu0 0.0
        %1413 = vmatmul.mubr.f32.gmra.mxu0 %v1099
        %v1414 = vpop.f32.mrf.mxu0
        %v1415 = vadd.f32 %v1008, %v1414
        %v1416 = vpop.f32.mrf.mxu0
        %1417 = vmatprep.mubr.f32.mxu0 0.0
        %1418 = vmatmul.mubr.f32.gmra.mxu0 %v1102
        %v1419 = vpop.f32.mrf.mxu0
        %v1420 = vadd.f32 %v1008, %v1419
        %v1421 = vpop.f32.mrf.mxu0
        %1422 = vmatprep.mubr.f32.mxu0 0.0
        %1423 = vmatmul.mubr.f32.gmra.mxu0 %v1105
        %v1424 = vpop.f32.mrf.mxu0
        %v1425 = vadd.f32 %v1008, %v1424
        %v1426 = vpop.f32.mrf.mxu0
        %1427 = vmatprep.mubr.f32.mxu0 0.0
        %1428 = vmatmul.mubr.f32.gmra.mxu0 %v1108
        %v1429 = vpop.f32.mrf.mxu0
        %v1430 = vadd.f32 %v1008, %v1429
        %v1431 = vpop.f32.mrf.mxu0
        %1432 = vmatprep.mubr.f32.mxu0 0.0
        %1433 = vmatmul.mubr.f32.gmra.mxu0 %v1111
        %v1434 = vpop.f32.mrf.mxu0
        %v1435 = vadd.f32 %v1008, %v1434
        %v1436 = vpop.f32.mrf.mxu0
        %1437 = vmatprep.mubr.f32.mxu0 0.0
        %1438 = vmatmul.mubr.f32.gmra.mxu0 %v1114
        %v1439 = vpop.f32.mrf.mxu0
        %v1440 = vadd.f32 %v1008, %v1439
        %v1441 = vpop.f32.mrf.mxu0
        %1442 = vmatprep.mubr.f32.mxu0 0.0
        %1443 = vmatmul.mubr.f32.gmra.mxu0 %v1117
        %v1444 = vpop.f32.mrf.mxu0
        %v1445 = vadd.f32 %v1008, %v1444
        %v1446 = vpop.f32.mrf.mxu0
        %1447 = vmatprep.mubr.f32.mxu0 0.0
        %1448 = vmatmul.mubr.f32.gmra.mxu0 %v1120
        %v1449 = vpop.f32.mrf.mxu0
        %v1450 = vadd.f32 %v1008, %v1449
        %v1451 = vpop.f32.mrf.mxu0
        %1452 = vmatprep.mubr.f32.mxu0 0.0
        %1453 = vmatmul.mubr.f32.gmra.mxu0 %v1123
        %v1454 = vpop.f32.mrf.mxu0
        %v1455 = vadd.f32 %v1008, %v1454
        %v1456 = vpop.f32.mrf.mxu0
        %1457 = vmatprep.mubr.f32.mxu0 0.0
        %1458 = vmatmul.mubr.f32.gmra.mxu0 %v1126
        %v1459 = vpop.f32.mrf.mxu0
        %v1460 = vadd.f32 %v1008, %v1459
        %v1461 = vpop.f32.mrf.mxu0
        %1462 = vmatprep.mubr.f32.mxu0 0.0
        %1463 = vmatmul.mubr.f32.gmra.mxu0 %v1129
        %v1464 = vpop.f32.mrf.mxu0
        %v1465 = vadd.f32 %v1008, %v1464
        %v1466 = vpop.f32.mrf.mxu0
        %1467 = vmatprep.mubr.f32.mxu0 0.0
        %1468 = vmatmul.mubr.f32.gmra.mxu0 %v1132
        %v1469 = vpop.f32.mrf.mxu0
        %v1470 = vadd.f32 %v1008, %v1469
        %v1471 = vpop.f32.mrf.mxu0
        %1472 = vmatprep.mubr.f32.mxu0 0.0
        %1473 = vmatmul.mubr.f32.gmra.mxu0 %v1135
        %v1474 = vpop.f32.mrf.mxu0
        %v1475 = vadd.f32 %v1008, %v1474
        %v1476 = vpop.f32.mrf.mxu0
        %1477 = vmatprep.mubr.f32.mxu0 0.0
        %1478 = vmatmul.mubr.f32.gmra.mxu0 %v1138
        %v1479 = vpop.f32.mrf.mxu0
        %v1480 = vadd.f32 %v1008, %v1479
        %v1481 = vpop.f32.mrf.mxu0
        %1482 = vmatprep.mubr.f32.mxu0 0.0
        %1483 = vmatmul.mubr.f32.gmra.mxu0 %v1141
        %v1484 = vpop.f32.mrf.mxu0
        %v1485 = vadd.f32 %v1008, %v1484
        %v1486 = vpop.f32.mrf.mxu0
        %1487 = vmatprep.mubr.f32.mxu0 0.0
        %1488 = vmatmul.mubr.f32.gmra.mxu0 %v1144
        %v1489 = vpop.f32.mrf.mxu0
        %v1490 = vadd.f32 %v1008, %v1489
        %v1491 = vpop.f32.mrf.mxu0
        %1492 = vmatprep.mubr.f32.mxu0 0.0
        %1493 = vmatmul.mubr.f32.gmra.mxu0 %v1147
        %v1494 = vpop.f32.mrf.mxu0
        %v1495 = vadd.f32 %v1008, %v1494
        %v1496 = vpop.f32.mrf.mxu0
        %1497 = vmatprep.mubr.f32.mxu0 0.0
        %1498 = vmatmul.mubr.f32.gmra.mxu0 %v1150
        %v1499 = vpop.f32.mrf.mxu0
        %v1500 = vadd.f32 %v1008, %v1499
        %v1501 = vpop.f32.mrf.mxu0
        %1502 = vmatprep.mubr.f32.mxu0 0.0
        %1503 = vmatmul.mubr.f32.gmra.mxu0 %v1153
        %v1504 = vpop.f32.mrf.mxu0
        %v1505 = vadd.f32 %v1008, %v1504
        %v1506 = vpop.f32.mrf.mxu0
        %1507 = vmatprep.mubr.f32.mxu0 0.0
        %1508 = vmatmul.mubr.f32.gmra.mxu0 %v1156
        %v1509 = vpop.f32.mrf.mxu0
        %v1510 = vadd.f32 %v1008, %v1509
        %v1511 = vpop.f32.mrf.mxu0
        %1512 = vmatprep.mubr.f32.mxu0 0.0
        %1513 = vmatmul.mubr.f32.gmra.mxu0 %v1159
        %v1514 = vpop.f32.mrf.mxu0
        %v1515 = vadd.f32 %v1008, %v1514
        %v1516 = vpop.f32.mrf.mxu0
        %1517 = vmatprep.mubr.f32.mxu0 0.0
        %1518 = vmatmul.mubr.f32.gmra.mxu0 %v1162
        %v1519 = vpop.f32.mrf.mxu0
        %v1520 = vadd.f32 %v1008, %v1519
        %v1521 = vpop.f32.mrf.mxu0
        %1522 = vmatprep.mubr.f32.mxu0 0.0
        %1523 = vmatmul.mubr.f32.gmra.mxu0 %v1165
        %v1524 = vpop.f32.mrf.mxu0
        %v1525 = vadd.f32 %v1008, %v1524
        %v1526 = vpop.f32.mrf.mxu0
        %1527 = vmatprep.mubr.f32.mxu0 0.0
        %1528 = vmatmul.mubr.f32.gmra.mxu0 %v1168
        %v1529 = vpop.f32.mrf.mxu0
        %v1530 = vadd.f32 %v1008, %v1529
        %v1531 = vpop.f32.mrf.mxu0
        %1532 = vmatprep.mubr.f32.mxu0 0.0
        %1533 = vmatmul.mubr.f32.gmra.mxu0 %v1171
        %v1534 = vpop.f32.mrf.mxu0
        %v1535 = vadd.f32 %v1008, %v1534
        %v1536 = vpop.f32.mrf.mxu0
        %1537 = vmatprep.mubr.f32.mxu0 0.0
        %1538 = vmatmul.mubr.f32.gmra.mxu0 %v1174
        %v1539 = vpop.f32.mrf.mxu0
        %v1540 = vadd.f32 %v1008, %v1539
        %v1541 = vpop.f32.mrf.mxu0
        %1542 = vmatprep.mubr.f32.mxu0 0.0
        %1543 = vmatmul.mubr.f32.gmra.mxu0 %v1177
        %v1544 = vpop.f32.mrf.mxu0
        %v1545 = vadd.f32 %v1008, %v1544
        %v1546 = vpop.f32.mrf.mxu0
        %1547 = vmatprep.mubr.f32.mxu0 0.0
        %1548 = vmatmul.mubr.f32.gmra.mxu0 %v1180
        %v1549 = vpop.f32.mrf.mxu0
        %v1550 = vadd.f32 %v1008, %v1549
        %v1551 = vpop.f32.mrf.mxu0
        %1552 = vmatprep.mubr.f32.mxu0 0.0
        %1553 = vmatmul.mubr.f32.gmra.mxu0 %v1183
        %v1554 = vpop.f32.mrf.mxu0
        %v1555 = vadd.f32 %v1008, %v1554
        %v1556 = vpop.f32.mrf.mxu0
        %1557 = vmatprep.mubr.f32.mxu0 0.0
        %1558 = vmatmul.mubr.f32.gmra.mxu0 %v1186
        %v1559 = vpop.f32.mrf.mxu0
        %v1560 = vadd.f32 %v1008, %v1559
        %v1561 = vpop.f32.mrf.mxu0
        %1562 = vmatprep.mubr.f32.mxu0 0.0
        %1563 = vmatmul.mubr.f32.gmra.mxu0 %v1189
        %v1564 = vpop.f32.mrf.mxu0
        %v1565 = vadd.f32 %v1008, %v1564
        %v1566 = vpop.f32.mrf.mxu0
        %1567 = vmatprep.mubr.f32.mxu0 0.0
        %1568 = vmatmul.mubr.f32.gmra.mxu0 %v1192
        %v1569 = vpop.f32.mrf.mxu0
        %v1570 = vadd.f32 %v1008, %v1569
        %v1571 = vpop.f32.mrf.mxu0
        %1572 = vmatprep.mubr.f32.mxu0 0.0
        %1573 = vmatmul.mubr.f32.gmra.mxu0 %v1195
        %v1574 = vpop.f32.mrf.mxu0
        %v1575 = vadd.f32 %v1008, %v1574
        %v1576 = vpop.f32.mrf.mxu0
        %1577 = vmatprep.mubr.f32.mxu0 0.0
        %1578 = vmatmul.mubr.f32.gmra.mxu0 %v1198
        %v1579 = vpop.f32.mrf.mxu0
        %v1580 = vadd.f32 %v1008, %v1579
        %v1581 = vpop.f32.mrf.mxu0
        %1582 = vmatprep.mubr.f32.mxu0 0.0
        %1583 = vmatmul.mubr.f32.gmra.mxu0 %v1201
        %v1584 = vpop.f32.mrf.mxu0
        %v1585 = vadd.f32 %v1008, %v1584
        %v1586 = vpop.f32.mrf.mxu0
        %1587 = vdwg.mxu0
        %v1588 = vmax.f32 %v1270, 0.0
        %v1589 = vmax.f32 %v1275, 0.0
        %v1590 = vmax.f32 %v1280, 0.0
        %v1591 = vmax.f32 %v1285, 0.0
        %v1592 = vmax.f32 %v1290, 0.0
        %v1593 = vmax.f32 %v1295, 0.0
        %v1594 = vmax.f32 %v1300, 0.0
        %v1595 = vmax.f32 %v1305, 0.0
        %v1596 = vmax.f32 %v1310, 0.0
        %v1597 = vmax.f32 %v1315, 0.0
        %v1598 = vmax.f32 %v1320, 0.0
        %v1599 = vmax.f32 %v1325, 0.0
        %v1600 = vmax.f32 %v1330, 0.0
        %v1601 = vmax.f32 %v1335, 0.0
        %v1602 = vmax.f32 %v1340, 0.0
        %v1603 = vmax.f32 %v1345, 0.0
        %v1604 = vmax.f32 %v1350, 0.0
        %v1605 = vmax.f32 %v1355, 0.0
        %v1606 = vmax.f32 %v1360, 0.0
        %v1607 = vmax.f32 %v1365, 0.0
        %v1608 = vmax.f32 %v1370, 0.0
        %v1609 = vmax.f32 %v1375, 0.0
        %v1610 = vmax.f32 %v1380, 0.0
        %v1611 = vmax.f32 %v1385, 0.0
        %v1612 = vmax.f32 %v1390, 0.0
        %v1613 = vmax.f32 %v1395, 0.0
        %v1614 = vmax.f32 %v1400, 0.0
        %v1615 = vmax.f32 %v1405, 0.0
        %v1616 = vmax.f32 %v1410, 0.0
        %v1617 = vmax.f32 %v1415, 0.0
        %v1618 = vmax.f32 %v1420, 0.0
        %v1619 = vmax.f32 %v1425, 0.0
        %v1620 = vmax.f32 %v1430, 0.0
        %v1621 = vmax.f32 %v1435, 0.0
        %v1622 = vmax.f32 %v1440, 0.0
        %v1623 = vmax.f32 %v1445, 0.0
        %v1624 = vmax.f32 %v1450, 0.0
        %v1625 = vmax.f32 %v1455, 0.0
        %v1626 = vmax.f32 %v1460, 0.0
        %v1627 = vmax.f32 %v1465, 0.0
        %v1628 = vmax.f32 %v1470, 0.0
        %v1629 = vmax.f32 %v1475, 0.0
        %v1630 = vmax.f32 %v1480, 0.0
        %v1631 = vmax.f32 %v1485, 0.0
        %v1632 = vmax.f32 %v1490, 0.0
        %v1633 = vmax.f32 %v1495, 0.0
        %v1634 = vmax.f32 %v1500, 0.0
        %v1635 = vmax.f32 %v1505, 0.0
        %v1636 = vmax.f32 %v1510, 0.0
        %v1637 = vmax.f32 %v1515, 0.0
        %v1638 = vmax.f32 %v1520, 0.0
        %v1639 = vmax.f32 %v1525, 0.0
        %v1640 = vmax.f32 %v1530, 0.0
        %v1641 = vmax.f32 %v1535, 0.0
        %v1642 = vmax.f32 %v1540, 0.0
        %v1643 = vmax.f32 %v1545, 0.0
        %v1644 = vmax.f32 %v1550, 0.0
        %v1645 = vmax.f32 %v1555, 0.0
        %v1646 = vmax.f32 %v1560, 0.0
        %v1647 = vmax.f32 %v1565, 0.0
        %v1648 = vmax.f32 %v1570, 0.0
        %v1649 = vmax.f32 %v1575, 0.0
        %v1650 = vmax.f32 %v1580, 0.0
        %v1651 = vmax.f32 %v1585, 0.0
        %v1652 = vld [vmem:[%s5] sm:$0xff]
        %vm1653 = vcmask 64512
        %v1655 = vsel %vm1653, %v1652, 0
        %v1658 = vsel %vm1653, %v1588, 0
        %v1661 = vsel %vm1653, %v1589, 0
        %v1664 = vsel %vm1653, %v1590, 0
        %v1667 = vsel %vm1653, %v1591, 0
        %v1670 = vsel %vm1653, %v1592, 0
        %v1673 = vsel %vm1653, %v1593, 0
        %v1676 = vsel %vm1653, %v1594, 0
        %v1679 = vsel %vm1653, %v1595, 0
        %v1682 = vsel %vm1653, %v1596, 0
        %v1685 = vsel %vm1653, %v1597, 0
        %v1688 = vsel %vm1653, %v1598, 0
        %v1691 = vsel %vm1653, %v1599, 0
        %v1694 = vsel %vm1653, %v1600, 0
        %v1697 = vsel %vm1653, %v1601, 0
        %v1700 = vsel %vm1653, %v1602, 0
        %v1703 = vsel %vm1653, %v1603, 0
        %v1706 = vsel %vm1653, %v1604, 0
        %v1709 = vsel %vm1653, %v1605, 0
        %v1712 = vsel %vm1653, %v1606, 0
        %v1715 = vsel %vm1653, %v1607, 0
        %v1718 = vsel %vm1653, %v1608, 0
        %v1721 = vsel %vm1653, %v1609, 0
        %v1724 = vsel %vm1653, %v1610, 0
        %v1727 = vsel %vm1653, %v1611, 0
        %v1730 = vsel %vm1653, %v1612, 0
        %v1733 = vsel %vm1653, %v1613, 0
        %v1736 = vsel %vm1653, %v1614, 0
        %v1739 = vsel %vm1653, %v1615, 0
        %v1742 = vsel %vm1653, %v1616, 0
        %v1745 = vsel %vm1653, %v1617, 0
        %v1748 = vsel %vm1653, %v1618, 0
        %v1751 = vsel %vm1653, %v1619, 0
        %v1754 = vsel %vm1653, %v1620, 0
        %v1757 = vsel %vm1653, %v1621, 0
        %v1760 = vsel %vm1653, %v1622, 0
        %v1763 = vsel %vm1653, %v1623, 0
        %v1766 = vsel %vm1653, %v1624, 0
        %v1769 = vsel %vm1653, %v1625, 0
        %v1772 = vsel %vm1653, %v1626, 0
        %v1775 = vsel %vm1653, %v1627, 0
        %v1778 = vsel %vm1653, %v1628, 0
        %v1781 = vsel %vm1653, %v1629, 0
        %v1784 = vsel %vm1653, %v1630, 0
        %v1787 = vsel %vm1653, %v1631, 0
        %v1790 = vsel %vm1653, %v1632, 0
        %v1793 = vsel %vm1653, %v1633, 0
        %v1796 = vsel %vm1653, %v1634, 0
        %v1799 = vsel %vm1653, %v1635, 0
        %v1802 = vsel %vm1653, %v1636, 0
        %v1805 = vsel %vm1653, %v1637, 0
        %v1808 = vsel %vm1653, %v1638, 0
        %v1811 = vsel %vm1653, %v1639, 0
        %v1814 = vsel %vm1653, %v1640, 0
        %v1817 = vsel %vm1653, %v1641, 0
        %v1820 = vsel %vm1653, %v1642, 0
        %v1823 = vsel %vm1653, %v1643, 0
        %v1826 = vsel %vm1653, %v1644, 0
        %v1829 = vsel %vm1653, %v1645, 0
        %v1832 = vsel %vm1653, %v1646, 0
        %v1835 = vsel %vm1653, %v1647, 0
        %v1838 = vsel %vm1653, %v1648, 0
        %v1841 = vsel %vm1653, %v1649, 0
        %v1844 = vsel %vm1653, %v1650, 0
        %v1847 = vsel %vm1653, %v1651, 0
        %1849 = vmatprep.subr.mxu0 0.0
        %1850 = vmatpush1.xpose.msra.mxu0 %v1703
        %1851 = vmatprep.subr.mxu0 0.0
        %1852 = vmatpush1.xpose.msra.mxu0 %v1700
        %1853 = vmatprep.subr.mxu0 0.0
        %1854 = vmatpush1.xpose.msra.mxu0 %v1697
        %1855 = vmatprep.subr.mxu0 0.0
        %1856 = vmatpush1.xpose.msra.mxu0 %v1694
        %1857 = vmatprep.subr.mxu0 0.0
        %1858 = vmatpush1.xpose.msra.mxu0 %v1691
        %1859 = vmatprep.subr.mxu0 0.0
        %1860 = vmatpush1.xpose.msra.mxu0 %v1688
        %1861 = vmatprep.subr.mxu0 0.0
        %1862 = vmatpush1.xpose.msra.mxu0 %v1685
        %1863 = vmatprep.subr.mxu0 0.0
        %1864 = vmatpush1.xpose.msra.mxu0 %v1682
        %1865 = vmatprep.subr.mxu0 0.0
        %1866 = vmatpush1.xpose.msra.mxu0 %v1679
        %1867 = vmatprep.subr.mxu0 0.0
        %1868 = vmatpush1.xpose.msra.mxu0 %v1676
        %1869 = vmatprep.subr.mxu0 0.0
        %1870 = vmatpush1.xpose.msra.mxu0 %v1673
        %1871 = vmatprep.subr.mxu0 0.0
        %1872 = vmatpush1.xpose.msra.mxu0 %v1670
        %1873 = vmatprep.subr.mxu0 0.0
        %1874 = vmatpush1.xpose.msra.mxu0 %v1667
        %1875 = vmatprep.subr.mxu0 0.0
        %1876 = vmatpush1.xpose.msra.mxu0 %v1664
        %1877 = vmatprep.subr.mxu0 0.0
        %1878 = vmatpush1.xpose.msra.mxu0 %v1661
        %1879 = vmatprep.subr.mxu0 0.0
        %1880 = vmatpush1.xpose.msra.mxu0 %v1658
        %1881 = vmatprep.subr.mxu0 0.0
        %1882 = vmatpush2.xpose.msra.mxu0 %v1751
        %1883 = vmatprep.subr.mxu0 0.0
        %1884 = vmatpush2.xpose.msra.mxu0 %v1748
        %1885 = vmatprep.subr.mxu0 0.0
        %1886 = vmatpush2.xpose.msra.mxu0 %v1745
        %1887 = vmatprep.subr.mxu0 0.0
        %1888 = vmatpush2.xpose.msra.mxu0 %v1742
        %1889 = vmatprep.subr.mxu0 0.0
        %1890 = vmatpush2.xpose.msra.mxu0 %v1739
        %1891 = vmatprep.subr.mxu0 0.0
        %1892 = vmatpush2.xpose.msra.mxu0 %v1736
        %1893 = vmatprep.subr.mxu0 0.0
        %1894 = vmatpush2.xpose.msra.mxu0 %v1733
        %1895 = vmatprep.subr.mxu0 0.0
        %1896 = vmatpush2.xpose.msra.mxu0 %v1730
        %1897 = vmatprep.subr.mxu0 0.0
        %1898 = vmatpush2.xpose.msra.mxu0 %v1727
        %1899 = vmatprep.subr.mxu0 0.0
        %1900 = vmatpush2.xpose.msra.mxu0 %v1724
        %1901 = vmatprep.subr.mxu0 0.0
        %1902 = vmatpush2.xpose.msra.mxu0 %v1721
        %1903 = vmatprep.subr.mxu0 0.0
        %1904 = vmatpush2.xpose.msra.mxu0 %v1718
        %1905 = vmatprep.subr.mxu0 0.0
        %1906 = vmatpush2.xpose.msra.mxu0 %v1715
        %1907 = vmatprep.subr.mxu0 0.0
        %1908 = vmatpush2.xpose.msra.mxu0 %v1712
        %1909 = vmatprep.subr.mxu0 0.0
        %1910 = vmatpush2.xpose.msra.mxu0 %v1709
        %1911 = vmatprep.subr.mxu0 0.0
        %1912 = vmatpush2.xpose.msra.mxu0 %v1706
        %1913 = vmatprep.mubr.f32.mxu0 0.0
        %1914 = vmatmul.mubr.f32.gmra.mxu0 %v1655
        %v1915 = vpop.f32.mrf.mxu0
        %v1916 = vadd.f32 0.0, %v1915
        %v1917 = vpop.f32.mrf.mxu0
        %v1918 = vadd.f32 0.0, %v1917
        %1919 = vdwg.mxu0
        %1920 = vmatprep.subr.mxu0 0.0
        %1921 = vmatpush1.xpose.msra.mxu0 %v1799
        %1922 = vmatprep.subr.mxu0 0.0
        %1923 = vmatpush1.xpose.msra.mxu0 %v1796
        %1924 = vmatprep.subr.mxu0 0.0
        %1925 = vmatpush1.xpose.msra.mxu0 %v1793
        %1926 = vmatprep.subr.mxu0 0.0
        %1927 = vmatpush1.xpose.msra.mxu0 %v1790
        %1928 = vmatprep.subr.mxu0 0.0
        %1929 = vmatpush1.xpose.msra.mxu0 %v1787
        %1930 = vmatprep.subr.mxu0 0.0
        %1931 = vmatpush1.xpose.msra.mxu0 %v1784
        %1932 = vmatprep.subr.mxu0 0.0
        %1933 = vmatpush1.xpose.msra.mxu0 %v1781
        %1934 = vmatprep.subr.mxu0 0.0
        %1935 = vmatpush1.xpose.msra.mxu0 %v1778
        %1936 = vmatprep.subr.mxu0 0.0
        %1937 = vmatpush1.xpose.msra.mxu0 %v1775
        %1938 = vmatprep.subr.mxu0 0.0
        %1939 = vmatpush1.xpose.msra.mxu0 %v1772
        %1940 = vmatprep.subr.mxu0 0.0
        %1941 = vmatpush1.xpose.msra.mxu0 %v1769
        %1942 = vmatprep.subr.mxu0 0.0
        %1943 = vmatpush1.xpose.msra.mxu0 %v1766
        %1944 = vmatprep.subr.mxu0 0.0
        %1945 = vmatpush1.xpose.msra.mxu0 %v1763
        %1946 = vmatprep.subr.mxu0 0.0
        %1947 = vmatpush1.xpose.msra.mxu0 %v1760
        %1948 = vmatprep.subr.mxu0 0.0
        %1949 = vmatpush1.xpose.msra.mxu0 %v1757
        %1950 = vmatprep.subr.mxu0 0.0
        %1951 = vmatpush1.xpose.msra.mxu0 %v1754
        %1952 = vmatprep.subr.mxu0 0.0
        %1953 = vmatpush2.xpose.msra.mxu0 %v1847
        %1954 = vmatprep.subr.mxu0 0.0
        %1955 = vmatpush2.xpose.msra.mxu0 %v1844
        %1956 = vmatprep.subr.mxu0 0.0
        %1957 = vmatpush2.xpose.msra.mxu0 %v1841
        %1958 = vmatprep.subr.mxu0 0.0
        %1959 = vmatpush2.xpose.msra.mxu0 %v1838
        %1960 = vmatprep.subr.mxu0 0.0
        %1961 = vmatpush2.xpose.msra.mxu0 %v1835
        %1962 = vmatprep.subr.mxu0 0.0
        %1963 = vmatpush2.xpose.msra.mxu0 %v1832
        %1964 = vmatprep.subr.mxu0 0.0
        %1965 = vmatpush2.xpose.msra.mxu0 %v1829
        %1966 = vmatprep.subr.mxu0 0.0
        %1967 = vmatpush2.xpose.msra.mxu0 %v1826
        %1968 = vmatprep.subr.mxu0 0.0
        %1969 = vmatpush2.xpose.msra.mxu0 %v1823
        %1970 = vmatprep.subr.mxu0 0.0
        %1971 = vmatpush2.xpose.msra.mxu0 %v1820
        %1972 = vmatprep.subr.mxu0 0.0
        %1973 = vmatpush2.xpose.msra.mxu0 %v1817
        %1974 = vmatprep.subr.mxu0 0.0
        %1975 = vmatpush2.xpose.msra.mxu0 %v1814
        %1976 = vmatprep.subr.mxu0 0.0
        %1977 = vmatpush2.xpose.msra.mxu0 %v1811
        %1978 = vmatprep.subr.mxu0 0.0
        %1979 = vmatpush2.xpose.msra.mxu0 %v1808
        %1980 = vmatprep.subr.mxu0 0.0
        %1981 = vmatpush2.xpose.msra.mxu0 %v1805
        %1982 = vmatprep.subr.mxu0 0.0
        %1983 = vmatpush2.xpose.msra.mxu0 %v1802
        %1984 = vmatprep.mubr.f32.mxu0 0.0
        %1985 = vmatmul.mubr.f32.gmra.mxu0 %v1655
        %v1986 = vpop.f32.mrf.mxu0
        %v1987 = vadd.f32 0.0, %v1986
        %v1988 = vpop.f32.mrf.mxu0
        %v1989 = vadd.f32 0.0, %v1988
        %1990 = vdwg.mxu0
        %v1991 = vld [vmem:[#allocation2] sm:$0x1]
        %1993 = vset.pattern.permute.xlu0 0
        %1994 = vperm.xlu0 %1993, %v1991
        %v1995 = vpop.permute.xlu0 %1994
        %v1997 = vlaneseq
        %v1998 = vshrl.u32 %v1997, 7
        %v1999 = vsub.s32 0, %v1998
        %v2000 = vrot.slane %v1995, %v1999
        %v2001 = vadd.f32 %v1916, %v2000
        %v2002 = vadd.f32 %v1918, %v2000
        %v2003 = vadd.f32 %v1987, %v2000
        %v2004 = vadd.f32 %v1989, %v2000
        %v2005 = vmul.f32 %v2001, 0.5
        %v2006 = vmul.f32 %v2002, 0.5
        %v2007 = vmul.f32 %v2003, 0.5
        %v2008 = vmul.f32 %v2004, 0.5
        %v2009 = vtanh.pop %v2005
        %v2010 = vtanh.pop %v2006
        %v2011 = vtanh.pop %v2007
        %v2012 = vtanh.pop %v2008
        %v2013 = vmul.f32 %v2009, 0.5
        %v2014 = vmul.f32 %v2010, 0.5
        %v2015 = vmul.f32 %v2011, 0.5
        %v2016 = vmul.f32 %v2012, 0.5
        %v2017 = vadd.f32 %v2013, 0.5
        %v2018 = vadd.f32 %v2014, 0.5
        %v2019 = vadd.f32 %v2015, 0.5
        %v2020 = vadd.f32 %v2016, 0.5
        %v2025 = vcombine.low %v2017, %v2018
        %v2026 = vcombine.low %v2019, %v2020
        %v2028 = vunpack.c.l.s4 1966171168
        %v2029 = vunpack.c.0.s8 %v2028
        %v2030 = vlaneseq
        %v2031 = vshrl.u32 %v2030, 7
        %v2032 = vsub.s32 %v2029, %v2031
        %v2033 = vrot.slane %v2025, %v2032
        %v2035 = vunpack.c.l.s4 1966171168
        %v2036 = vunpack.c.0.s8 %v2035
        %v2037 = vlaneseq
        %v2038 = vshrl.u32 %v2037, 7
        %v2039 = vsub.s32 %v2036, %v2038
        %v2040 = vrot.slane %v2026, %v2039
        %v2041 = vcombine.low %v2033, %v2040
        %v2043 = vunpack.c.l.s4 1966171168
        %v2044 = vunpack.c.0.s8 %v2043
        %v2045 = vlaneseq
        %v2046 = vshrl.u32 %v2045, 7
        %v2047 = vsub.s32 %v2044, %v2046
        %v2048 = vrot.slane %v2041, %v2047
        %v2050 = vlaneseq
        %vm2051 = vcmp.ge.s32.totalorder %v2050, 0
        %vm2052 = vcmp.lt.s32.totalorder %v2050, 512
        %vm2053 = vmand %vm2051, %vm2052
        %2054 = vst.msk [vmem:[%s274] sm:$0xf] %vm2053, %v2048
        %s2055 = sand.u32 %s183, 1
        %s2056 = scalar_lea.sflag [#allocation4], %s2055
        %s2057 = sand.u32 %s183, 1
        %s2058 = smul.addr %s2057, 4
        %s2059 = scalar_lea.vmem [#allocation3], %s2058
        // Predicated region
        $region49: #{tpu_custom_call.1} parent=47 // pred_check
          %p2060 = pneg %p193
        $region50: #{tpu_custom_call.1} parent=47 // pred_check_branch
          %2062 = sbr.rel (%p2060) target = $region52
        $region51: #{tpu_custom_call.1} parent=47 // pred_region
          %s2063 = smul.u32 4, %s23
          %s2065 = ssub.s32 64, 64
          %2066 = vsyncadd %s2056, %s2065
          %s2067 = smul.addr %s2063, 16
          %s2068 = scalar_lea.hbm %s7, %s2067
          %s2070 = sshll.u32 %s2059, 4
          %s2071 = int_to_ptr.vmem [resolvable:$true] %s2070
          %2073 = dma.vmem_to_hbm [thread:$0]  %s2071, 64, %s2068, %s2056
        $region52: #{tpu_custom_call.1} parent=47 // pred_fallthru
          _
      $region48: #{tpu_custom_call.1} parent=5 // pred_fallthru
        _
      %p2074 = scmp.le.s32.totalorder 2, %s18
      // Predicated region
      $region53: #{tpu_custom_call.1} parent=5 // pred_check
        %p2075 = pneg %p2074
      $region54: #{tpu_custom_call.1} parent=5 // pred_check_branch
        %2077 = sbr.rel (%p2075) target = $region56
      $region55: #{tpu_custom_call.1} parent=5 // pred_region
        %s2078 = ssub.s32 %s18, 2
        // Predicated region
        $region57: #{tpu_custom_call.1} parent=55 // pred_check
          %p2079 = pneg %p199
        $region58: #{tpu_custom_call.1} parent=55 // pred_check_branch
          %2081 = sbr.rel (%p2079) target = $region60
        $region59: #{tpu_custom_call.1} parent=55 // pred_region
          %s2082 = sand.u32 %s184, 1
          %s2083 = scalar_lea.sflag [#allocation4], %s2082
          %s2084 = sand.u32 %s184, 1
          %s2085 = smul.addr %s2084, 4
          %s2086 = scalar_lea.vmem [#allocation3], %s2085
          %2087 = dma.done %s2083, 64
        $region60: #{tpu_custom_call.1} parent=55 // pred_fallthru
          _
      $region56: #{tpu_custom_call.1} parent=5 // pred_fallthru
        _
    $region6: #{tpu_custom_call.1} parent=1 // loop_footer
      %s22 = sadd.s32 1, %s18
    $region7: #{tpu_custom_call.1} parent=1 // loop_footer_branch
      %17 = sbr.rel target = $region3
    $region8: #{tpu_custom_call.1} parent=1 // loop_exit
      _
    %2088 = vsyncpa [#allocation4], 1
    %s2089 = scalar_lea.sflag [#allocation4], 1
    %2090 = vsyncpa %s2089, 1

</llo_original>
